<compile_context>
chip_gen: v7x
topology: tpu7x:2x2x1
jax: 0.10.0
libtpu: 0.0.40
codegen_flags: <defaults>
</compile_context>

<pallas_src>
import functools

import jax
import jax.numpy as jnp
from jax.experimental import pallas as pl
from jax.experimental.pallas import tpu as pltpu


def _mish_conv_kernel(x_ref, w_ref, b_ref, o_ref, patch_ref, *, H, W, KH, KW, C_in):
    """One batch element: Mish -> im2col -> single MXU matmul -> +bias.

    x_ref:     (1, H+KH-1, W+KW-1, C_in)  zero-padded input block
    w_ref:     (KH*KW*C_in, C_out_pad)    bf16 weights (tap-major rows)
    b_ref:     (1, C_out_pad)             f32 bias (zero padded)
    o_ref:     (1, H*W, C_out_pad)        lane-dense output block
    patch_ref: (H*W, KH*KW*C_in)          f32 VMEM scratch (im2col patches)
    """
    xp = x_ref[0].astype(jnp.float32)                     # (Hp, Wp, C_in)

    # One-exp Mish: mish(x) = x * tanh(softplus(x)) = x * (u^2-1)/(u^2+1),
    # u = 1 + exp(x).  Clamp the exp argument; for x >= 20, mish(x) == x to
    # f32 precision and the clamped formula still returns x.  Mish(0) == 0
    # exactly, so the zero padding stays zero.
    e = jnp.exp(jnp.minimum(xp, 20.0))
    t = (1.0 + e) * (1.0 + e)
    m = xp * (t - 1.0) * pl.reciprocal(t + 1.0, approx=True)

    # im2col: write each of the KH*KW shifted (H*W, C_in) windows into its
    # column slot of the scratch patch matrix (static lane offsets).
    for kh in range(KH):
        for kw in range(KW):
            col = (kh * KW + kw) * C_in
            patch_ref[:, col:col + C_in] = (
                m[kh:kh + H, kw:kw + W, :].reshape(H * W, C_in))

    # Single MXU matmul: bf16 operands, f32 accumulator, lane-dense output.
    patch = patch_ref[...].astype(jnp.bfloat16)           # (H*W, K)
    acc = jnp.dot(patch, w_ref[...],
                  preferred_element_type=jnp.float32)     # (H*W, C_out_pad)
    o_ref[0] = (acc + b_ref[...]).astype(o_ref.dtype)


def mish_nxn_conv(x_nchw, weight_oihw, bias, kernel_size):
    """Forward pass of MISH_NxNConv.

    x_nchw:      (B, C_in, H, W)   -- PyTorch NCHW input
    weight_oihw: (C_out, C_in, KH, KW)
    bias:        (C_out,)
    Returns (B, C_out, H, W).
    """
    B, C_in, H, W = x_nchw.shape
    C_out, _, KH, KW = weight_oihw.shape
    assert KH == kernel_size and KW == kernel_size
    assert kernel_size % 2 == 1, "padding='same' with even kernel not handled"
    pad = (kernel_size - 1) // 2
    Hp, Wp = H + 2 * pad, W + 2 * pad
    K = KH * KW * C_in
    C_out_p = ((C_out + 127) // 128) * 128     # lane-dense (128-multiple) channels

    # TODO(synk): an NHWC-native pipeline would drop these two transposes and
    # the pad (each an extra HBM pass); kept to preserve the NCHW PyTorch API.
    x_nhwc = jnp.transpose(x_nchw, (0, 2, 3, 1))
    x_pad = jnp.pad(x_nhwc, ((0, 0), (pad, pad), (pad, pad), (0, 0)))

    # (C_out, C_in, KH, KW) -> (KH, KW, C_in, C_out) -> (K, C_out_p) bf16,
    # row order matches the in-kernel im2col column order (kh, kw, ci).
    w = jnp.transpose(weight_oihw, (2, 3, 1, 0)).reshape(K, C_out)
    w = jnp.pad(w, ((0, 0), (0, C_out_p - C_out))).astype(jnp.bfloat16)
    b = jnp.pad(bias.reshape(1, C_out).astype(jnp.float32),
                ((0, 0), (0, C_out_p - C_out)))

    kernel = functools.partial(
        _mish_conv_kernel, H=H, W=W, KH=KH, KW=KW, C_in=C_in)

    # TODO(synk): for large H*W add row tiling with halo (grid=(B, H//TH)) so
    # the blocks fit v7x's 64 MiB VMEM and feed both TensorCores at small B;
    # unnecessary at these shapes (per-batch block is a few KiB).
    out = pl.pallas_call(
        kernel,
        out_shape=jax.ShapeDtypeStruct((B, H * W, C_out_p), x_nchw.dtype),
        grid_spec=pltpu.PrefetchScalarGridSpec(
            num_scalar_prefetch=0,
            grid=(B,),
            in_specs=[
                pl.BlockSpec((1, Hp, Wp, C_in), lambda bi: (bi, 0, 0, 0)),
                pl.BlockSpec((K, C_out_p), lambda bi: (0, 0)),
                pl.BlockSpec((1, C_out_p), lambda bi: (0, 0)),
            ],
            out_specs=pl.BlockSpec((1, H * W, C_out_p), lambda bi: (bi, 0, 0)),
            scratch_shapes=[pltpu.VMEM((H * W, K), jnp.float32)],
        ),
        compiler_params=pltpu.CompilerParams(
            dimension_semantics=("parallel",)),
    )(x_pad, w, b)

    # Strip channel padding, NHWC -> NCHW.
    out_nhwc = out[:, :, :C_out].reshape(B, H, W, C_out)
    return jnp.transpose(out_nhwc, (0, 3, 1, 2))


def _reference(x_nchw, weight_oihw, bias):
    """Pure-JAX f32 reference: Mish -> same-padded conv (PyTorch semantics)."""
    m = x_nchw * jnp.tanh(jax.nn.softplus(x_nchw))
    out = jax.lax.conv_general_dilated(
        m, weight_oihw, window_strides=(1, 1), padding="SAME",
        dimension_numbers=("NCHW", "OIHW", "NCHW"))
    return out + bias.reshape(1, -1, 1, 1)


if __name__ == "__main__":
    B, C_in, H, W = 2, 4, 16, 16
    C_out, kernel_size = 8, 3

    key = jax.random.PRNGKey(0)
    kx, kw, kb = jax.random.split(key, 3)
    x = jax.random.normal(kx, (B, C_in, H, W), dtype=jnp.float32)
    # Deterministic synthetic parameters (shapes match nn.Conv2d(C_in, C_out, k)).
    fan_in = C_in * kernel_size * kernel_size
    bound = 1.0 / (fan_in ** 0.5)
    weight = jax.random.uniform(
        kw, (C_out, C_in, kernel_size, kernel_size),
        minval=-bound, maxval=bound, dtype=jnp.float32)
    bias = jax.random.uniform(
        kb, (C_out,), minval=-bound, maxval=bound, dtype=jnp.float32)

    out = mish_nxn_conv(x, weight, bias, kernel_size)
    out = jax.block_until_ready(out)

    ref = _reference(x, weight, bias)
    assert out.shape == (B, C_out, H, W)
    # bf16 MXU operands + approx-reciprocal Mish vs the f32 reference:
    # expected error is a few 1e-3; keep the f32 accumulator to bound it.
    assert jnp.allclose(out, ref, atol=2e-2, rtol=2e-2), "mismatch vs reference"

    print("KERNEL_OK")
</pallas_src>

<mosaic_0001>
module attributes {stable_mosaic.version = 11 : i64} {
  func.func @_mish_conv_kernel(%arg0: i32, %arg1: memref<1x18x18x4xf32, #tpu.memory_space<vmem>>, %arg2: memref<36x128xbf16, #tpu.memory_space<vmem>>, %arg3: memref<1x128xf32, #tpu.memory_space<vmem>>, %arg4: memref<1x256x128xf32, #tpu.memory_space<vmem>>, %arg5: memref<256x36xf32, #tpu.memory_space<vmem>>) attributes {dimension_semantics = [#tpu.dimension_semantics<parallel>], iteration_bounds = array<i64: 2>, scalar_prefetch = 0 : i64, scratch_operands = 1 : i64, tpu.core_type = #tpu.core_type<tc>, window_params = [{transform_indices = @transform_0, window_bounds = array<i64: 1, 18, 18, 4>}, {pipeline_mode = #tpu.pipeline_mode<synchronous>, transform_indices = @transform_1, window_bounds = array<i64: 36, 128>}, {pipeline_mode = #tpu.pipeline_mode<synchronous>, transform_indices = @transform_2, window_bounds = array<i64: 1, 128>}, {transform_indices = @transform_3, window_bounds = array<i64: 1, 256, 128>}]} {
    %c0 = arith.constant 0 : index
    %c0_0 = arith.constant 0 : index
    %c0_1 = arith.constant 0 : index
    %c0_2 = arith.constant 0 : index
    %0 = vector.load %arg1[%c0, %c0_0, %c0_1, %c0_2] : memref<1x18x18x4xf32, #tpu.memory_space<vmem>>, vector<1x18x18x4xf32>
    %1 = vector.shape_cast %0 : vector<1x18x18x4xf32> to vector<18x18x4xf32>
    %cst = arith.constant 2.000000e+01 : f32
    %2 = vector.broadcast %cst : f32 to vector<18x18x4xf32>
    %3 = arith.minimumf %1, %2 : vector<18x18x4xf32>
    %4 = math.exp %3 : vector<18x18x4xf32>
    %cst_3 = arith.constant 1.000000e+00 : f32
    %5 = vector.broadcast %cst_3 : f32 to vector<18x18x4xf32>
    %6 = arith.addf %5, %4 : vector<18x18x4xf32>
    %cst_4 = arith.constant 1.000000e+00 : f32
    %7 = vector.broadcast %cst_4 : f32 to vector<18x18x4xf32>
    %8 = arith.addf %7, %4 : vector<18x18x4xf32>
    %9 = arith.mulf %6, %8 : vector<18x18x4xf32>
    %cst_5 = arith.constant 1.000000e+00 : f32
    %10 = vector.broadcast %cst_5 : f32 to vector<18x18x4xf32>
    %11 = arith.subf %9, %10 : vector<18x18x4xf32>
    %12 = arith.mulf %1, %11 : vector<18x18x4xf32>
    %cst_6 = arith.constant 1.000000e+00 : f32
    %13 = vector.broadcast %cst_6 : f32 to vector<18x18x4xf32>
    %14 = arith.addf %9, %13 : vector<18x18x4xf32>
    %15 = tpu.reciprocal %14 {approx = true} : vector<18x18x4xf32> -> vector<18x18x4xf32>
    %16 = arith.mulf %12, %15 : vector<18x18x4xf32>
    %17 = vector.extract_strided_slice %16 {offsets = [0, 0, 0], sizes = [16, 16, 4], strides = [1, 1, 1]} : vector<18x18x4xf32> to vector<16x16x4xf32>
    %18 = vector.shape_cast %17 : vector<16x16x4xf32> to vector<256x4xf32>
    %c0_7 = arith.constant 0 : index
    %c0_8 = arith.constant 0 : index
    %19 = vector.load %arg5[%c0_7, %c0_8] : memref<256x36xf32, #tpu.memory_space<vmem>>, vector<256x4xf32>
    tpu.vector_store %arg5[%c0_7, %c0_8], %18 {strides = array<i32>} : memref<256x36xf32, #tpu.memory_space<vmem>>, vector<256x4xf32>,
    %20 = vector.extract_strided_slice %16 {offsets = [0, 1, 0], sizes = [16, 16, 4], strides = [1, 1, 1]} : vector<18x18x4xf32> to vector<16x16x4xf32>
    %21 = vector.shape_cast %20 : vector<16x16x4xf32> to vector<256x4xf32>
    %c0_9 = arith.constant 0 : index
    %c4 = arith.constant 4 : index
    %22 = vector.load %arg5[%c0_9, %c4] : memref<256x36xf32, #tpu.memory_space<vmem>>, vector<256x4xf32>
    tpu.vector_store %arg5[%c0_9, %c4], %21 {strides = array<i32>} : memref<256x36xf32, #tpu.memory_space<vmem>>, vector<256x4xf32>,
    %23 = vector.extract_strided_slice %16 {offsets = [0, 2, 0], sizes = [16, 16, 4], strides = [1, 1, 1]} : vector<18x18x4xf32> to vector<16x16x4xf32>
    %24 = vector.shape_cast %23 : vector<16x16x4xf32> to vector<256x4xf32>
    %c0_10 = arith.constant 0 : index
    %c8 = arith.constant 8 : index
    %25 = vector.load %arg5[%c0_10, %c8] : memref<256x36xf32, #tpu.memory_space<vmem>>, vector<256x4xf32>
    tpu.vector_store %arg5[%c0_10, %c8], %24 {strides = array<i32>} : memref<256x36xf32, #tpu.memory_space<vmem>>, vector<256x4xf32>,
    %26 = vector.extract_strided_slice %16 {offsets = [1, 0, 0], sizes = [16, 16, 4], strides = [1, 1, 1]} : vector<18x18x4xf32> to vector<16x16x4xf32>
    %27 = vector.shape_cast %26 : vector<16x16x4xf32> to vector<256x4xf32>
    %c0_11 = arith.constant 0 : index
    %c12 = arith.constant 12 : index
    %28 = vector.load %arg5[%c0_11, %c12] : memref<256x36xf32, #tpu.memory_space<vmem>>, vector<256x4xf32>
    tpu.vector_store %arg5[%c0_11, %c12], %27 {strides = array<i32>} : memref<256x36xf32, #tpu.memory_space<vmem>>, vector<256x4xf32>,
    %29 = vector.extract_strided_slice %16 {offsets = [1, 1, 0], sizes = [16, 16, 4], strides = [1, 1, 1]} : vector<18x18x4xf32> to vector<16x16x4xf32>
    %30 = vector.shape_cast %29 : vector<16x16x4xf32> to vector<256x4xf32>
    %c0_12 = arith.constant 0 : index
    %c16 = arith.constant 16 : index
    %31 = vector.load %arg5[%c0_12, %c16] : memref<256x36xf32, #tpu.memory_space<vmem>>, vector<256x4xf32>
    tpu.vector_store %arg5[%c0_12, %c16], %30 {strides = array<i32>} : memref<256x36xf32, #tpu.memory_space<vmem>>, vector<256x4xf32>,
    %32 = vector.extract_strided_slice %16 {offsets = [1, 2, 0], sizes = [16, 16, 4], strides = [1, 1, 1]} : vector<18x18x4xf32> to vector<16x16x4xf32>
    %33 = vector.shape_cast %32 : vector<16x16x4xf32> to vector<256x4xf32>
    %c0_13 = arith.constant 0 : index
    %c20 = arith.constant 20 : index
    %34 = vector.load %arg5[%c0_13, %c20] : memref<256x36xf32, #tpu.memory_space<vmem>>, vector<256x4xf32>
    tpu.vector_store %arg5[%c0_13, %c20], %33 {strides = array<i32>} : memref<256x36xf32, #tpu.memory_space<vmem>>, vector<256x4xf32>,
    %35 = vector.extract_strided_slice %16 {offsets = [2, 0, 0], sizes = [16, 16, 4], strides = [1, 1, 1]} : vector<18x18x4xf32> to vector<16x16x4xf32>
    %36 = vector.shape_cast %35 : vector<16x16x4xf32> to vector<256x4xf32>
    %c0_14 = arith.constant 0 : index
    %c24 = arith.constant 24 : index
    %37 = vector.load %arg5[%c0_14, %c24] : memref<256x36xf32, #tpu.memory_space<vmem>>, vector<256x4xf32>
    tpu.vector_store %arg5[%c0_14, %c24], %36 {strides = array<i32>} : memref<256x36xf32, #tpu.memory_space<vmem>>, vector<256x4xf32>,
    %38 = vector.extract_strided_slice %16 {offsets = [2, 1, 0], sizes = [16, 16, 4], strides = [1, 1, 1]} : vector<18x18x4xf32> to vector<16x16x4xf32>
    %39 = vector.shape_cast %38 : vector<16x16x4xf32> to vector<256x4xf32>
    %c0_15 = arith.constant 0 : index
    %c28 = arith.constant 28 : index
    %40 = vector.load %arg5[%c0_15, %c28] : memref<256x36xf32, #tpu.memory_space<vmem>>, vector<256x4xf32>
    tpu.vector_store %arg5[%c0_15, %c28], %39 {strides = array<i32>} : memref<256x36xf32, #tpu.memory_space<vmem>>, vector<256x4xf32>,
    %41 = vector.extract_strided_slice %16 {offsets = [2, 2, 0], sizes = [16, 16, 4], strides = [1, 1, 1]} : vector<18x18x4xf32> to vector<16x16x4xf32>
    %42 = vector.shape_cast %41 : vector<16x16x4xf32> to vector<256x4xf32>
    %c0_16 = arith.constant 0 : index
    %c32 = arith.constant 32 : index
    %43 = vector.load %arg5[%c0_16, %c32] : memref<256x36xf32, #tpu.memory_space<vmem>>, vector<256x4xf32>
    tpu.vector_store %arg5[%c0_16, %c32], %42 {strides = array<i32>} : memref<256x36xf32, #tpu.memory_space<vmem>>, vector<256x4xf32>,
    %c0_17 = arith.constant 0 : index
    %c0_18 = arith.constant 0 : index
    %44 = vector.load %arg5[%c0_17, %c0_18] : memref<256x36xf32, #tpu.memory_space<vmem>>, vector<256x36xf32>
    %45 = arith.truncf %44 : vector<256x36xf32> to vector<256x36xbf16>
    %c0_19 = arith.constant 0 : index
    %c0_20 = arith.constant 0 : index
    %46 = vector.load %arg2[%c0_19, %c0_20] : memref<36x128xbf16, #tpu.memory_space<vmem>>, vector<36x128xbf16>
    %cst_21 = arith.constant dense<0.000000e+00> : vector<256x128xf32>
    %47 = tpu.matmul %45, %46, %cst_21 {dimension_numbers = #tpu.dot_dimension_numbers<[1], [0], [0], [1], [0, 0, 1, 1], [], []>} : vector<256x36xbf16>, vector<36x128xbf16>, vector<256x128xf32> -> vector<256x128xf32>
    %c0_22 = arith.constant 0 : index
    %c0_23 = arith.constant 0 : index
    %48 = vector.load %arg3[%c0_22, %c0_23] : memref<1x128xf32, #tpu.memory_space<vmem>>, vector<1x128xf32>
    %49 = vector.broadcast %48 : vector<1x128xf32> to vector<256x128xf32>
    %50 = arith.addf %47, %49 : vector<256x128xf32>
    %c0_24 = arith.constant 0 : index
    %c0_25 = arith.constant 0 : index
    %c0_26 = arith.constant 0 : index
    %51 = vector.load %arg4[%c0_24, %c0_25, %c0_26] : memref<1x256x128xf32, #tpu.memory_space<vmem>>, vector<1x256x128xf32>
    %52 = vector.shape_cast %51 : vector<1x256x128xf32> to vector<256x128xf32>
    %53 = vector.shape_cast %50 : vector<256x128xf32> to vector<1x256x128xf32>
    tpu.vector_store %arg4[%c0_24, %c0_25, %c0_26], %53 {strides = array<i32>} : memref<1x256x128xf32, #tpu.memory_space<vmem>>, vector<1x256x128xf32>,
    return
  }
  func.func @transform_0(%arg0: i32) -> (i32, i32, i32, i32) {
    %c0_i32 = arith.constant 0 : i32
    %c0_i32_0 = arith.constant 0 : i32
    %c0_i32_1 = arith.constant 0 : i32
    %c0_i32_2 = arith.constant 0 : i32
    return %arg0, %c0_i32, %c0_i32_0, %c0_i32_1 : i32, i32, i32, i32
  }
  func.func @transform_1(%arg0: i32) -> (i32, i32) {
    %c0_i32 = arith.constant 0 : i32
    %c0_i32_0 = arith.constant 0 : i32
    %c0_i32_1 = arith.constant 0 : i32
    return %c0_i32, %c0_i32_0 : i32, i32
  }
  func.func @transform_2(%arg0: i32) -> (i32, i32) {
    %c0_i32 = arith.constant 0 : i32
    %c0_i32_0 = arith.constant 0 : i32
    %c0_i32_1 = arith.constant 0 : i32
    return %c0_i32, %c0_i32_0 : i32, i32
  }
  func.func @transform_3(%arg0: i32) -> (i32, i32, i32) {
    %c0_i32 = arith.constant 0 : i32
    %c0_i32_0 = arith.constant 0 : i32
    %c0_i32_1 = arith.constant 0 : i32
    return %arg0, %c0_i32, %c0_i32_0 : i32, i32, i32
  }
}

</mosaic_0001>

<llo_original>
// kernel: tpu_custom_call.1
$region0: #{tpu_custom_call.1}
  #allocation0 [shape = 'u32[]', space=smem, size = 0x4, offset = 0x4, fixed_abs, tag = 'smem constant byte address 0x4 - core index']
  #allocation1 [shape = 'u32[144,128]{1,0:T(1,128)}', space=vmem, size = 0x12000, scoped, tag = 'internal scratch']
  #allocation2 [shape = 'f32[256,36]{1,0:T(8,128)}', space=vmem, size = 0x20000, scoped, tag = 'scratch operand']
  %s0 = inlined_call_operand.vmem [shape: f32[2,18,18,4], index: 0, kind: input, shape index: {}]
  %s1 = inlined_call_operand.vmem [shape: bf16[36,128], index: 1, kind: input, shape index: {}]
  %s2 = inlined_call_operand.vmem [shape: f32[1,128], index: 2, kind: input, shape index: {}]
  %s3 = inlined_call_operand.hbm [shape: f32[2,256,128], index: 3, kind: output, shape index: {}]
  %s4 = sld [smem:[#allocation0]]
  $region45: #{tpu_custom_call.1} parent=0
    _
  %s6 = ssub.s32 1, %s4
  %s7 = scalar_select 0, %s6, %s4
  $region1: #{tpu_custom_call.1} parent=0
    #allocation3 [shape = 'u8[262144]{0}', space=vmem, size = 0x40000, scoped, tag = 'output window, operand 0']
    #allocation4 [shape = 's32[2]{0}', space=sflag, size = 0x8, scoped, tag = 'scoped memory for tpu_custom_call.1']
    %8 = vsyncpa [#allocation4], 0
    %s9 = scalar_lea.sflag [#allocation4], 1
    %10 = vsyncpa %s9, 0
    loop: start=0, step=1, limit=4
    $region2: #{tpu_custom_call.1} parent=1 // loop_pre_header
      _
    $region3: #{tpu_custom_call.1} parent=1 // loop_header
      %s12 = sphi 0, %s16
      %p13 = scmp.ge.s32.totalorder %s12, 4
      %s22 = sphi 0, %s24
      %s25 = sphi 0, %s22
      %s26 = sphi 0, %s25
      %s42 = sphi 0, %s26
      %s46 = sphi 0, %s46
      %s48 = sphi 0, %s46
      %s49 = sphi 0, %s48
      %s63 = sphi 0, %s49
      %s67 = sphi 0, %s67
      %s69 = sphi 0, %s67
      %s70 = sphi 0, %s69
      %s84 = sphi 0, %s70
      %s90 = sphi 0, %s92
      %s93 = sphi 0, %s90
      %s94 = sphi 0, %s93
      %s110 = sphi 0, %s94
    $region4: #{tpu_custom_call.1} parent=1 // loop_header_branch
      %15 = sbr.rel (%p13) target = $region8
    $region5: #{tpu_custom_call.1} parent=1 // loop_body
      %s17 = ssub.s32 %s12, 1
      %s18 = ssub.s32 %s12, 2
      %s19 = sadd.s32 %s12, 1
      %s20 = ssub.s32 %s12, %s19
      %p21 = scmp.eq.s32.totalorder %s20, 0
      %s23 = sadd.s32 %s22, 1
      %s24 = scalar_select %p21, %s22, %s23
      %p27 = pneg %p21
      %p28 = scmp.eq.s32.totalorder %s12, 1
      %p29 = por %p27, %p28
      %p30 = scmp.ne.s32.totalorder %s22, %s25
      %p31 = scmp.eq.s32.totalorder %s12, 0
      %p32 = por %p30, %p31
      %p33 = scmp.ne.s32.totalorder %s22, %s25
      %p34 = scmp.eq.s32.totalorder %s17, 1
      %p35 = por %p33, %p34
      %p36 = scmp.ne.s32.totalorder %s25, %s26
      %p37 = scmp.eq.s32.totalorder %s17, 0
      %p38 = por %p36, %p37
      %p39 = scmp.ne.s32.totalorder %s25, %s26
      %p40 = scmp.eq.s32.totalorder %s18, 1
      %p41 = por %p39, %p40
      %p43 = scmp.ne.s32.totalorder %s26, %s42
      %p44 = scmp.eq.s32.totalorder %s18, 0
      %p45 = por %p43, %p44
      %s47 = sadd.s32 %s46, 1
      %p50 = scmp.eq.s32.totalorder %s12, 1
      %p51 = scmp.ne.s32.totalorder %s46, %s48
      %p52 = scmp.eq.s32.totalorder %s12, 0
      %p53 = por %p51, %p52
      %p54 = scmp.ne.s32.totalorder %s46, %s48
      %p55 = scmp.eq.s32.totalorder %s17, 1
      %p56 = por %p54, %p55
      %p57 = scmp.ne.s32.totalorder %s48, %s49
      %p58 = scmp.eq.s32.totalorder %s17, 0
      %p59 = por %p57, %p58
      %p60 = scmp.ne.s32.totalorder %s48, %s49
      %p61 = scmp.eq.s32.totalorder %s18, 1
      %p62 = por %p60, %p61
      %p64 = scmp.ne.s32.totalorder %s49, %s63
      %p65 = scmp.eq.s32.totalorder %s18, 0
      %p66 = por %p64, %p65
      %s68 = sadd.s32 %s67, 1
      %p71 = scmp.eq.s32.totalorder %s12, 1
      %p72 = scmp.ne.s32.totalorder %s67, %s69
      %p73 = scmp.eq.s32.totalorder %s12, 0
      %p74 = por %p72, %p73
      %p75 = scmp.ne.s32.totalorder %s67, %s69
      %p76 = scmp.eq.s32.totalorder %s17, 1
      %p77 = por %p75, %p76
      %p78 = scmp.ne.s32.totalorder %s69, %s70
      %p79 = scmp.eq.s32.totalorder %s17, 0
      %p80 = por %p78, %p79
      %p81 = scmp.ne.s32.totalorder %s69, %s70
      %p82 = scmp.eq.s32.totalorder %s18, 1
      %p83 = por %p81, %p82
      %p85 = scmp.ne.s32.totalorder %s70, %s84
      %p86 = scmp.eq.s32.totalorder %s18, 0
      %p87 = por %p85, %p86
      %s88 = ssub.s32 %s12, %s19
      %p89 = scmp.eq.s32.totalorder %s88, 0
      %s91 = sadd.s32 %s90, 1
      %s92 = scalar_select %p89, %s90, %s91
      %p95 = pneg %p89
      %p96 = scmp.eq.s32.totalorder %s12, 1
      %p97 = por %p95, %p96
      %p98 = scmp.ne.s32.totalorder %s90, %s93
      %p99 = scmp.eq.s32.totalorder %s12, 0
      %p100 = por %p98, %p99
      %p101 = scmp.ne.s32.totalorder %s90, %s93
      %p102 = scmp.eq.s32.totalorder %s17, 1
      %p103 = por %p101, %p102
      %p104 = scmp.ne.s32.totalorder %s93, %s94
      %p105 = scmp.eq.s32.totalorder %s17, 0
      %p106 = por %p104, %p105
      %p107 = scmp.ne.s32.totalorder %s93, %s94
      %p108 = scmp.eq.s32.totalorder %s18, 1
      %p109 = por %p107, %p108
      %p111 = scmp.ne.s32.totalorder %s94, %s110
      %p112 = scmp.eq.s32.totalorder %s18, 0
      %p113 = por %p111, %p112
      %p114 = scmp.le.s32.totalorder 1, %s12
      %p115 = scmp.lt.s32.totalorder %s12, 3
      %p116 = pnand %p114, %p115
      %p117 = pneg %p116
      // Predicated region
      $region9: #{tpu_custom_call.1} parent=5 // pred_check
        _
      $region10: #{tpu_custom_call.1} parent=5 // pred_check_branch
        %119 = sbr.rel (%p116) target = $region12
      $region11: #{tpu_custom_call.1} parent=5 // pred_region
        %s120 = ssub.s32 %s12, 1
        // Predicated region
        $region13: #{tpu_custom_call.1} parent=11 // pred_check
          %p121 = pneg %p59
        $region14: #{tpu_custom_call.1} parent=11 // pred_check_branch
          %123 = sbr.rel (%p121) target = $region16
        $region15: #{tpu_custom_call.1} parent=11 // pred_region
          _
        $region16: #{tpu_custom_call.1} parent=11 // pred_fallthru
          _
        // Predicated region
        $region17: #{tpu_custom_call.1} parent=11 // pred_check
          %p124 = pneg %p80
        $region18: #{tpu_custom_call.1} parent=11 // pred_check_branch
          %126 = sbr.rel (%p124) target = $region20
        $region19: #{tpu_custom_call.1} parent=11 // pred_region
          _
        $region20: #{tpu_custom_call.1} parent=11 // pred_fallthru
          _
      $region12: #{tpu_custom_call.1} parent=5 // pred_fallthru
        _
      %p127 = scmp.lt.s32.totalorder %s12, 2
      // Predicated region
      $region21: #{tpu_custom_call.1} parent=5 // pred_check
        %p128 = pneg %p127
      $region22: #{tpu_custom_call.1} parent=5 // pred_check_branch
        %130 = sbr.rel (%p128) target = $region24
      $region23: #{tpu_custom_call.1} parent=5 // pred_region
        // Predicated region
        $region25: #{tpu_custom_call.1} parent=23 // pred_check
          %p131 = pneg %p32
        $region26: #{tpu_custom_call.1} parent=23 // pred_check_branch
          %133 = sbr.rel (%p131) target = $region28
        $region27: #{tpu_custom_call.1} parent=23 // pred_region
          %p134 = scmp.lt.s32.totalorder %s12, 1
          %s135 = scalar_select %p134, %s12, 1
          %s136 = smul.addr %s135, 54
          %s137 = smul.addr %s136, 8
          %s138 = scalar_lea.vmem %s0, %s137
        $region28: #{tpu_custom_call.1} parent=23 // pred_fallthru
          _
      $region24: #{tpu_custom_call.1} parent=5 // pred_fallthru
        _
      %p139 = scmp.le.s32.totalorder 1, %s12
      %p140 = scmp.lt.s32.totalorder %s12, 3
      %p141 = pnand %p139, %p140
      %p142 = pneg %p141
      // Predicated region
      $region29: #{tpu_custom_call.1} parent=5 // pred_check
        _
      $region30: #{tpu_custom_call.1} parent=5 // pred_check_branch
        %144 = sbr.rel (%p141) target = $region32
      $region31: #{tpu_custom_call.1} parent=5 // pred_region
        %s145 = ssub.s32 %s12, 1
        %p146 = scmp.lt.s32.totalorder %s17, 1
        %s147 = scalar_select %p146, %s17, 1
        %s148 = smul.addr %s147, 54
        %s149 = smul.addr %s148, 8
        %s150 = scalar_lea.vmem %s0, %s149
        %p151 = pneg %p38
        %p152 = pneg %p35
        %p153 = pneg %p59
        %p154 = pneg %p56
        %p155 = pneg %p80
        %p156 = pneg %p77
        %p157 = pneg %p106
        %p158 = pneg %p103
        %s159 = sand.u32 %s93, 1
        %s160 = scalar_lea.sflag [#allocation4], %s159
        %s161 = sand.u32 %s93, 1
        %s162 = smul.addr %s161, 256
        %s163 = scalar_lea.vmem [#allocation3], %s162
        %p164 = scmp.lt.s32.totalorder %s17, 1
        %s165 = scalar_select %p164, %s17, 1
        %s166 = smul.addr %s165, 54
        %s167 = smul.addr %s166, 8
        %s168 = scalar_lea.vmem %s0, %s167
        %v170 = vld [vmem:[%s168] sm:$0xff]
        %v171 = vld [vmem:[%s168 + $0x8] sm:$0xff]
        %v172 = vld [vmem:[%s168 + $0x10] sm:$0x3]
        %v173 = vld [vmem:[%s168 + $0x18] sm:$0xff]
        %v174 = vld [vmem:[%s168 + $0x20] sm:$0xff]
        %v175 = vld [vmem:[%s168 + $0x28] sm:$0x3]
        %v176 = vld [vmem:[%s168 + $0x30] sm:$0xff]
        %v177 = vld [vmem:[%s168 + $0x38] sm:$0xff]
        %v178 = vld [vmem:[%s168 + $0x40] sm:$0x3]
        %v179 = vld [vmem:[%s168 + $0x48] sm:$0xff]
        %v180 = vld [vmem:[%s168 + $0x50] sm:$0xff]
        %v181 = vld [vmem:[%s168 + $0x58] sm:$0x3]
        %v182 = vld [vmem:[%s168 + $0x60] sm:$0xff]
        %v183 = vld [vmem:[%s168 + $0x68] sm:$0xff]
        %v184 = vld [vmem:[%s168 + $0x70] sm:$0x3]
        %v185 = vld [vmem:[%s168 + $0x78] sm:$0xff]
        %v186 = vld [vmem:[%s168 + $0x80] sm:$0xff]
        %v187 = vld [vmem:[%s168 + $0x88] sm:$0x3]
        %v188 = vld [vmem:[%s168 + $0x90] sm:$0xff]
        %v189 = vld [vmem:[%s168 + $0x98] sm:$0xff]
        %v190 = vld [vmem:[%s168 + $0xa0] sm:$0x3]
        %v191 = vld [vmem:[%s168 + $0xa8] sm:$0xff]
        %v192 = vld [vmem:[%s168 + $0xb0] sm:$0xff]
        %v193 = vld [vmem:[%s168 + $0xb8] sm:$0x3]
        %v194 = vld [vmem:[%s168 + $0xc0] sm:$0xff]
        %v195 = vld [vmem:[%s168 + $0xc8] sm:$0xff]
        %v196 = vld [vmem:[%s168 + $0xd0] sm:$0x3]
        %v197 = vld [vmem:[%s168 + $0xd8] sm:$0xff]
        %v198 = vld [vmem:[%s168 + $0xe0] sm:$0xff]
        %v199 = vld [vmem:[%s168 + $0xe8] sm:$0x3]
        %v200 = vld [vmem:[%s168 + $0xf0] sm:$0xff]
        %v201 = vld [vmem:[%s168 + $0xf8] sm:$0xff]
        %v202 = vld [vmem:[%s168 + $0x100] sm:$0x3]
        %v203 = vld [vmem:[%s168 + $0x108] sm:$0xff]
        %v204 = vld [vmem:[%s168 + $0x110] sm:$0xff]
        %v205 = vld [vmem:[%s168 + $0x118] sm:$0x3]
        %v206 = vld [vmem:[%s168 + $0x120] sm:$0xff]
        %v207 = vld [vmem:[%s168 + $0x128] sm:$0xff]
        %v208 = vld [vmem:[%s168 + $0x130] sm:$0x3]
        %v209 = vld [vmem:[%s168 + $0x138] sm:$0xff]
        %v210 = vld [vmem:[%s168 + $0x140] sm:$0xff]
        %v211 = vld [vmem:[%s168 + $0x148] sm:$0x3]
        %v212 = vld [vmem:[%s168 + $0x150] sm:$0xff]
        %v213 = vld [vmem:[%s168 + $0x158] sm:$0xff]
        %v214 = vld [vmem:[%s168 + $0x160] sm:$0x3]
        %v215 = vld [vmem:[%s168 + $0x168] sm:$0xff]
        %v216 = vld [vmem:[%s168 + $0x170] sm:$0xff]
        %v217 = vld [vmem:[%s168 + $0x178] sm:$0x3]
        %v218 = vld [vmem:[%s168 + $0x180] sm:$0xff]
        %v219 = vld [vmem:[%s168 + $0x188] sm:$0xff]
        %v220 = vld [vmem:[%s168 + $0x190] sm:$0x3]
        %v221 = vld [vmem:[%s168 + $0x198] sm:$0xff]
        %v222 = vld [vmem:[%s168 + $0x1a0] sm:$0xff]
        %v223 = vld [vmem:[%s168 + $0x1a8] sm:$0x3]
        %v224 = vmin.f32 %v170, 20.0
        %v225 = vmin.f32 %v171, 20.0
        %v226 = vmin.f32 %v172, 20.0
        %v227 = vmin.f32 %v173, 20.0
        %v228 = vmin.f32 %v174, 20.0
        %v229 = vmin.f32 %v175, 20.0
        %v230 = vmin.f32 %v176, 20.0
        %v231 = vmin.f32 %v177, 20.0
        %v232 = vmin.f32 %v178, 20.0
        %v233 = vmin.f32 %v179, 20.0
        %v234 = vmin.f32 %v180, 20.0
        %v235 = vmin.f32 %v181, 20.0
        %v236 = vmin.f32 %v182, 20.0
        %v237 = vmin.f32 %v183, 20.0
        %v238 = vmin.f32 %v184, 20.0
        %v239 = vmin.f32 %v185, 20.0
        %v240 = vmin.f32 %v186, 20.0
        %v241 = vmin.f32 %v187, 20.0
        %v242 = vmin.f32 %v188, 20.0
        %v243 = vmin.f32 %v189, 20.0
        %v244 = vmin.f32 %v190, 20.0
        %v245 = vmin.f32 %v191, 20.0
        %v246 = vmin.f32 %v192, 20.0
        %v247 = vmin.f32 %v193, 20.0
        %v248 = vmin.f32 %v194, 20.0
        %v249 = vmin.f32 %v195, 20.0
        %v250 = vmin.f32 %v196, 20.0
        %v251 = vmin.f32 %v197, 20.0
        %v252 = vmin.f32 %v198, 20.0
        %v253 = vmin.f32 %v199, 20.0
        %v254 = vmin.f32 %v200, 20.0
        %v255 = vmin.f32 %v201, 20.0
        %v256 = vmin.f32 %v202, 20.0
        %v257 = vmin.f32 %v203, 20.0
        %v258 = vmin.f32 %v204, 20.0
        %v259 = vmin.f32 %v205, 20.0
        %v260 = vmin.f32 %v206, 20.0
        %v261 = vmin.f32 %v207, 20.0
        %v262 = vmin.f32 %v208, 20.0
        %v263 = vmin.f32 %v209, 20.0
        %v264 = vmin.f32 %v210, 20.0
        %v265 = vmin.f32 %v211, 20.0
        %v266 = vmin.f32 %v212, 20.0
        %v267 = vmin.f32 %v213, 20.0
        %v268 = vmin.f32 %v214, 20.0
        %v269 = vmin.f32 %v215, 20.0
        %v270 = vmin.f32 %v216, 20.0
        %v271 = vmin.f32 %v217, 20.0
        %v272 = vmin.f32 %v218, 20.0
        %v273 = vmin.f32 %v219, 20.0
        %v274 = vmin.f32 %v220, 20.0
        %v275 = vmin.f32 %v221, 20.0
        %v276 = vmin.f32 %v222, 20.0
        %v277 = vmin.f32 %v223, 20.0
        %v278 = vmul.f32 %v224, 1.442695
        %v279 = vpow.pop %v278
        %v280 = vmul.f32 %v225, 1.442695
        %v281 = vpow.pop %v280
        %v282 = vmul.f32 %v226, 1.442695
        %v283 = vpow.pop %v282
        %v284 = vmul.f32 %v227, 1.442695
        %v285 = vpow.pop %v284
        %v286 = vmul.f32 %v228, 1.442695
        %v287 = vpow.pop %v286
        %v288 = vmul.f32 %v229, 1.442695
        %v289 = vpow.pop %v288
        %v290 = vmul.f32 %v230, 1.442695
        %v291 = vpow.pop %v290
        %v292 = vmul.f32 %v231, 1.442695
        %v293 = vpow.pop %v292
        %v294 = vmul.f32 %v232, 1.442695
        %v295 = vpow.pop %v294
        %v296 = vmul.f32 %v233, 1.442695
        %v297 = vpow.pop %v296
        %v298 = vmul.f32 %v234, 1.442695
        %v299 = vpow.pop %v298
        %v300 = vmul.f32 %v235, 1.442695
        %v301 = vpow.pop %v300
        %v302 = vmul.f32 %v236, 1.442695
        %v303 = vpow.pop %v302
        %v304 = vmul.f32 %v237, 1.442695
        %v305 = vpow.pop %v304
        %v306 = vmul.f32 %v238, 1.442695
        %v307 = vpow.pop %v306
        %v308 = vmul.f32 %v239, 1.442695
        %v309 = vpow.pop %v308
        %v310 = vmul.f32 %v240, 1.442695
        %v311 = vpow.pop %v310
        %v312 = vmul.f32 %v241, 1.442695
        %v313 = vpow.pop %v312
        %v314 = vmul.f32 %v242, 1.442695
        %v315 = vpow.pop %v314
        %v316 = vmul.f32 %v243, 1.442695
        %v317 = vpow.pop %v316
        %v318 = vmul.f32 %v244, 1.442695
        %v319 = vpow.pop %v318
        %v320 = vmul.f32 %v245, 1.442695
        %v321 = vpow.pop %v320
        %v322 = vmul.f32 %v246, 1.442695
        %v323 = vpow.pop %v322
        %v324 = vmul.f32 %v247, 1.442695
        %v325 = vpow.pop %v324
        %v326 = vmul.f32 %v248, 1.442695
        %v327 = vpow.pop %v326
        %v328 = vmul.f32 %v249, 1.442695
        %v329 = vpow.pop %v328
        %v330 = vmul.f32 %v250, 1.442695
        %v331 = vpow.pop %v330
        %v332 = vmul.f32 %v251, 1.442695
        %v333 = vpow.pop %v332
        %v334 = vmul.f32 %v252, 1.442695
        %v335 = vpow.pop %v334
        %v336 = vmul.f32 %v253, 1.442695
        %v337 = vpow.pop %v336
        %v338 = vmul.f32 %v254, 1.442695
        %v339 = vpow.pop %v338
        %v340 = vmul.f32 %v255, 1.442695
        %v341 = vpow.pop %v340
        %v342 = vmul.f32 %v256, 1.442695
        %v343 = vpow.pop %v342
        %v344 = vmul.f32 %v257, 1.442695
        %v345 = vpow.pop %v344
        %v346 = vmul.f32 %v258, 1.442695
        %v347 = vpow.pop %v346
        %v348 = vmul.f32 %v259, 1.442695
        %v349 = vpow.pop %v348
        %v350 = vmul.f32 %v260, 1.442695
        %v351 = vpow.pop %v350
        %v352 = vmul.f32 %v261, 1.442695
        %v353 = vpow.pop %v352
        %v354 = vmul.f32 %v262, 1.442695
        %v355 = vpow.pop %v354
        %v356 = vmul.f32 %v263, 1.442695
        %v357 = vpow.pop %v356
        %v358 = vmul.f32 %v264, 1.442695
        %v359 = vpow.pop %v358
        %v360 = vmul.f32 %v265, 1.442695
        %v361 = vpow.pop %v360
        %v362 = vmul.f32 %v266, 1.442695
        %v363 = vpow.pop %v362
        %v364 = vmul.f32 %v267, 1.442695
        %v365 = vpow.pop %v364
        %v366 = vmul.f32 %v268, 1.442695
        %v367 = vpow.pop %v366
        %v368 = vmul.f32 %v269, 1.442695
        %v369 = vpow.pop %v368
        %v370 = vmul.f32 %v270, 1.442695
        %v371 = vpow.pop %v370
        %v372 = vmul.f32 %v271, 1.442695
        %v373 = vpow.pop %v372
        %v374 = vmul.f32 %v272, 1.442695
        %v375 = vpow.pop %v374
        %v376 = vmul.f32 %v273, 1.442695
        %v377 = vpow.pop %v376
        %v378 = vmul.f32 %v274, 1.442695
        %v379 = vpow.pop %v378
        %v380 = vmul.f32 %v275, 1.442695
        %v381 = vpow.pop %v380
        %v382 = vmul.f32 %v276, 1.442695
        %v383 = vpow.pop %v382
        %v384 = vmul.f32 %v277, 1.442695
        %v385 = vpow.pop %v384
        %v386 = vadd.f32 %v279, 1.0
        %v387 = vadd.f32 %v281, 1.0
        %v388 = vadd.f32 %v283, 1.0
        %v389 = vadd.f32 %v285, 1.0
        %v390 = vadd.f32 %v287, 1.0
        %v391 = vadd.f32 %v289, 1.0
        %v392 = vadd.f32 %v291, 1.0
        %v393 = vadd.f32 %v293, 1.0
        %v394 = vadd.f32 %v295, 1.0
        %v395 = vadd.f32 %v297, 1.0
        %v396 = vadd.f32 %v299, 1.0
        %v397 = vadd.f32 %v301, 1.0
        %v398 = vadd.f32 %v303, 1.0
        %v399 = vadd.f32 %v305, 1.0
        %v400 = vadd.f32 %v307, 1.0
        %v401 = vadd.f32 %v309, 1.0
        %v402 = vadd.f32 %v311, 1.0
        %v403 = vadd.f32 %v313, 1.0
        %v404 = vadd.f32 %v315, 1.0
        %v405 = vadd.f32 %v317, 1.0
        %v406 = vadd.f32 %v319, 1.0
        %v407 = vadd.f32 %v321, 1.0
        %v408 = vadd.f32 %v323, 1.0
        %v409 = vadd.f32 %v325, 1.0
        %v410 = vadd.f32 %v327, 1.0
        %v411 = vadd.f32 %v329, 1.0
        %v412 = vadd.f32 %v331, 1.0
        %v413 = vadd.f32 %v333, 1.0
        %v414 = vadd.f32 %v335, 1.0
        %v415 = vadd.f32 %v337, 1.0
        %v416 = vadd.f32 %v339, 1.0
        %v417 = vadd.f32 %v341, 1.0
        %v418 = vadd.f32 %v343, 1.0
        %v419 = vadd.f32 %v345, 1.0
        %v420 = vadd.f32 %v347, 1.0
        %v421 = vadd.f32 %v349, 1.0
        %v422 = vadd.f32 %v351, 1.0
        %v423 = vadd.f32 %v353, 1.0
        %v424 = vadd.f32 %v355, 1.0
        %v425 = vadd.f32 %v357, 1.0
        %v426 = vadd.f32 %v359, 1.0
        %v427 = vadd.f32 %v361, 1.0
        %v428 = vadd.f32 %v363, 1.0
        %v429 = vadd.f32 %v365, 1.0
        %v430 = vadd.f32 %v367, 1.0
        %v431 = vadd.f32 %v369, 1.0
        %v432 = vadd.f32 %v371, 1.0
        %v433 = vadd.f32 %v373, 1.0
        %v434 = vadd.f32 %v375, 1.0
        %v435 = vadd.f32 %v377, 1.0
        %v436 = vadd.f32 %v379, 1.0
        %v437 = vadd.f32 %v381, 1.0
        %v438 = vadd.f32 %v383, 1.0
        %v439 = vadd.f32 %v385, 1.0
        %v440 = vmul.f32 %v386, %v386
        %v441 = vmul.f32 %v387, %v387
        %v442 = vmul.f32 %v388, %v388
        %v443 = vmul.f32 %v389, %v389
        %v444 = vmul.f32 %v390, %v390
        %v445 = vmul.f32 %v391, %v391
        %v446 = vmul.f32 %v392, %v392
        %v447 = vmul.f32 %v393, %v393
        %v448 = vmul.f32 %v394, %v394
        %v449 = vmul.f32 %v395, %v395
        %v450 = vmul.f32 %v396, %v396
        %v451 = vmul.f32 %v397, %v397
        %v452 = vmul.f32 %v398, %v398
        %v453 = vmul.f32 %v399, %v399
        %v454 = vmul.f32 %v400, %v400
        %v455 = vmul.f32 %v401, %v401
        %v456 = vmul.f32 %v402, %v402
        %v457 = vmul.f32 %v403, %v403
        %v458 = vmul.f32 %v404, %v404
        %v459 = vmul.f32 %v405, %v405
        %v460 = vmul.f32 %v406, %v406
        %v461 = vmul.f32 %v407, %v407
        %v462 = vmul.f32 %v408, %v408
        %v463 = vmul.f32 %v409, %v409
        %v464 = vmul.f32 %v410, %v410
        %v465 = vmul.f32 %v411, %v411
        %v466 = vmul.f32 %v412, %v412
        %v467 = vmul.f32 %v413, %v413
        %v468 = vmul.f32 %v414, %v414
        %v469 = vmul.f32 %v415, %v415
        %v470 = vmul.f32 %v416, %v416
        %v471 = vmul.f32 %v417, %v417
        %v472 = vmul.f32 %v418, %v418
        %v473 = vmul.f32 %v419, %v419
        %v474 = vmul.f32 %v420, %v420
        %v475 = vmul.f32 %v421, %v421
        %v476 = vmul.f32 %v422, %v422
        %v477 = vmul.f32 %v423, %v423
        %v478 = vmul.f32 %v424, %v424
        %v479 = vmul.f32 %v425, %v425
        %v480 = vmul.f32 %v426, %v426
        %v481 = vmul.f32 %v427, %v427
        %v482 = vmul.f32 %v428, %v428
        %v483 = vmul.f32 %v429, %v429
        %v484 = vmul.f32 %v430, %v430
        %v485 = vmul.f32 %v431, %v431
        %v486 = vmul.f32 %v432, %v432
        %v487 = vmul.f32 %v433, %v433
        %v488 = vmul.f32 %v434, %v434
        %v489 = vmul.f32 %v435, %v435
        %v490 = vmul.f32 %v436, %v436
        %v491 = vmul.f32 %v437, %v437
        %v492 = vmul.f32 %v438, %v438
        %v493 = vmul.f32 %v439, %v439
        %v494 = vsub.f32 %v440, 1.0
        %v495 = vsub.f32 %v441, 1.0
        %v496 = vsub.f32 %v442, 1.0
        %v497 = vsub.f32 %v443, 1.0
        %v498 = vsub.f32 %v444, 1.0
        %v499 = vsub.f32 %v445, 1.0
        %v500 = vsub.f32 %v446, 1.0
        %v501 = vsub.f32 %v447, 1.0
        %v502 = vsub.f32 %v448, 1.0
        %v503 = vsub.f32 %v449, 1.0
        %v504 = vsub.f32 %v450, 1.0
        %v505 = vsub.f32 %v451, 1.0
        %v506 = vsub.f32 %v452, 1.0
        %v507 = vsub.f32 %v453, 1.0
        %v508 = vsub.f32 %v454, 1.0
        %v509 = vsub.f32 %v455, 1.0
        %v510 = vsub.f32 %v456, 1.0
        %v511 = vsub.f32 %v457, 1.0
        %v512 = vsub.f32 %v458, 1.0
        %v513 = vsub.f32 %v459, 1.0
        %v514 = vsub.f32 %v460, 1.0
        %v515 = vsub.f32 %v461, 1.0
        %v516 = vsub.f32 %v462, 1.0
        %v517 = vsub.f32 %v463, 1.0
        %v518 = vsub.f32 %v464, 1.0
        %v519 = vsub.f32 %v465, 1.0
        %v520 = vsub.f32 %v466, 1.0
        %v521 = vsub.f32 %v467, 1.0
        %v522 = vsub.f32 %v468, 1.0
        %v523 = vsub.f32 %v469, 1.0
        %v524 = vsub.f32 %v470, 1.0
        %v525 = vsub.f32 %v471, 1.0
        %v526 = vsub.f32 %v472, 1.0
        %v527 = vsub.f32 %v473, 1.0
        %v528 = vsub.f32 %v474, 1.0
        %v529 = vsub.f32 %v475, 1.0
        %v530 = vsub.f32 %v476, 1.0
        %v531 = vsub.f32 %v477, 1.0
        %v532 = vsub.f32 %v478, 1.0
        %v533 = vsub.f32 %v479, 1.0
        %v534 = vsub.f32 %v480, 1.0
        %v535 = vsub.f32 %v481, 1.0
        %v536 = vsub.f32 %v482, 1.0
        %v537 = vsub.f32 %v483, 1.0
        %v538 = vsub.f32 %v484, 1.0
        %v539 = vsub.f32 %v485, 1.0
        %v540 = vsub.f32 %v486, 1.0
        %v541 = vsub.f32 %v487, 1.0
        %v542 = vsub.f32 %v488, 1.0
        %v543 = vsub.f32 %v489, 1.0
        %v544 = vsub.f32 %v490, 1.0
        %v545 = vsub.f32 %v491, 1.0
        %v546 = vsub.f32 %v492, 1.0
        %v547 = vsub.f32 %v493, 1.0
        %v548 = vmul.f32 %v170, %v494
        %v549 = vmul.f32 %v171, %v495
        %v550 = vmul.f32 %v172, %v496
        %v551 = vmul.f32 %v173, %v497
        %v552 = vmul.f32 %v174, %v498
        %v553 = vmul.f32 %v175, %v499
        %v554 = vmul.f32 %v176, %v500
        %v555 = vmul.f32 %v177, %v501
        %v556 = vmul.f32 %v178, %v502
        %v557 = vmul.f32 %v179, %v503
        %v558 = vmul.f32 %v180, %v504
        %v559 = vmul.f32 %v181, %v505
        %v560 = vmul.f32 %v182, %v506
        %v561 = vmul.f32 %v183, %v507
        %v562 = vmul.f32 %v184, %v508
        %v563 = vmul.f32 %v185, %v509
        %v564 = vmul.f32 %v186, %v510
        %v565 = vmul.f32 %v187, %v511
        %v566 = vmul.f32 %v188, %v512
        %v567 = vmul.f32 %v189, %v513
        %v568 = vmul.f32 %v190, %v514
        %v569 = vmul.f32 %v191, %v515
        %v570 = vmul.f32 %v192, %v516
        %v571 = vmul.f32 %v193, %v517
        %v572 = vmul.f32 %v194, %v518
        %v573 = vmul.f32 %v195, %v519
        %v574 = vmul.f32 %v196, %v520
        %v575 = vmul.f32 %v197, %v521
        %v576 = vmul.f32 %v198, %v522
        %v577 = vmul.f32 %v199, %v523
        %v578 = vmul.f32 %v200, %v524
        %v579 = vmul.f32 %v201, %v525
        %v580 = vmul.f32 %v202, %v526
        %v581 = vmul.f32 %v203, %v527
        %v582 = vmul.f32 %v204, %v528
        %v583 = vmul.f32 %v205, %v529
        %v584 = vmul.f32 %v206, %v530
        %v585 = vmul.f32 %v207, %v531
        %v586 = vmul.f32 %v208, %v532
        %v587 = vmul.f32 %v209, %v533
        %v588 = vmul.f32 %v210, %v534
        %v589 = vmul.f32 %v211, %v535
        %v590 = vmul.f32 %v212, %v536
        %v591 = vmul.f32 %v213, %v537
        %v592 = vmul.f32 %v214, %v538
        %v593 = vmul.f32 %v215, %v539
        %v594 = vmul.f32 %v216, %v540
        %v595 = vmul.f32 %v217, %v541
        %v596 = vmul.f32 %v218, %v542
        %v597 = vmul.f32 %v219, %v543
        %v598 = vmul.f32 %v220, %v544
        %v599 = vmul.f32 %v221, %v545
        %v600 = vmul.f32 %v222, %v546
        %v601 = vmul.f32 %v223, %v547
        %v602 = vadd.f32 %v440, 1.0
        %v603 = vadd.f32 %v441, 1.0
        %v604 = vadd.f32 %v442, 1.0
        %v605 = vadd.f32 %v443, 1.0
        %v606 = vadd.f32 %v444, 1.0
        %v607 = vadd.f32 %v445, 1.0
        %v608 = vadd.f32 %v446, 1.0
        %v609 = vadd.f32 %v447, 1.0
        %v610 = vadd.f32 %v448, 1.0
        %v611 = vadd.f32 %v449, 1.0
        %v612 = vadd.f32 %v450, 1.0
        %v613 = vadd.f32 %v451, 1.0
        %v614 = vadd.f32 %v452, 1.0
        %v615 = vadd.f32 %v453, 1.0
        %v616 = vadd.f32 %v454, 1.0
        %v617 = vadd.f32 %v455, 1.0
        %v618 = vadd.f32 %v456, 1.0
        %v619 = vadd.f32 %v457, 1.0
        %v620 = vadd.f32 %v458, 1.0
        %v621 = vadd.f32 %v459, 1.0
        %v622 = vadd.f32 %v460, 1.0
        %v623 = vadd.f32 %v461, 1.0
        %v624 = vadd.f32 %v462, 1.0
        %v625 = vadd.f32 %v463, 1.0
        %v626 = vadd.f32 %v464, 1.0
        %v627 = vadd.f32 %v465, 1.0
        %v628 = vadd.f32 %v466, 1.0
        %v629 = vadd.f32 %v467, 1.0
        %v630 = vadd.f32 %v468, 1.0
        %v631 = vadd.f32 %v469, 1.0
        %v632 = vadd.f32 %v470, 1.0
        %v633 = vadd.f32 %v471, 1.0
        %v634 = vadd.f32 %v472, 1.0
        %v635 = vadd.f32 %v473, 1.0
        %v636 = vadd.f32 %v474, 1.0
        %v637 = vadd.f32 %v475, 1.0
        %v638 = vadd.f32 %v476, 1.0
        %v639 = vadd.f32 %v477, 1.0
        %v640 = vadd.f32 %v478, 1.0
        %v641 = vadd.f32 %v479, 1.0
        %v642 = vadd.f32 %v480, 1.0
        %v643 = vadd.f32 %v481, 1.0
        %v644 = vadd.f32 %v482, 1.0
        %v645 = vadd.f32 %v483, 1.0
        %v646 = vadd.f32 %v484, 1.0
        %v647 = vadd.f32 %v485, 1.0
        %v648 = vadd.f32 %v486, 1.0
        %v649 = vadd.f32 %v487, 1.0
        %v650 = vadd.f32 %v488, 1.0
        %v651 = vadd.f32 %v489, 1.0
        %v652 = vadd.f32 %v490, 1.0
        %v653 = vadd.f32 %v491, 1.0
        %v654 = vadd.f32 %v492, 1.0
        %v655 = vadd.f32 %v493, 1.0
        %v656 = vrcp.pop %v602
        %v657 = vrcp.pop %v603
        %v658 = vrcp.pop %v604
        %v659 = vrcp.pop %v605
        %v660 = vrcp.pop %v606
        %v661 = vrcp.pop %v607
        %v662 = vrcp.pop %v608
        %v663 = vrcp.pop %v609
        %v664 = vrcp.pop %v610
        %v665 = vrcp.pop %v611
        %v666 = vrcp.pop %v612
        %v667 = vrcp.pop %v613
        %v668 = vrcp.pop %v614
        %v669 = vrcp.pop %v615
        %v670 = vrcp.pop %v616
        %v671 = vrcp.pop %v617
        %v672 = vrcp.pop %v618
        %v673 = vrcp.pop %v619
        %v674 = vrcp.pop %v620
        %v675 = vrcp.pop %v621
        %v676 = vrcp.pop %v622
        %v677 = vrcp.pop %v623
        %v678 = vrcp.pop %v624
        %v679 = vrcp.pop %v625
        %v680 = vrcp.pop %v626
        %v681 = vrcp.pop %v627
        %v682 = vrcp.pop %v628
        %v683 = vrcp.pop %v629
        %v684 = vrcp.pop %v630
        %v685 = vrcp.pop %v631
        %v686 = vrcp.pop %v632
        %v687 = vrcp.pop %v633
        %v688 = vrcp.pop %v634
        %v689 = vrcp.pop %v635
        %v690 = vrcp.pop %v636
        %v691 = vrcp.pop %v637
        %v692 = vrcp.pop %v638
        %v693 = vrcp.pop %v639
        %v694 = vrcp.pop %v640
        %v695 = vrcp.pop %v641
        %v696 = vrcp.pop %v642
        %v697 = vrcp.pop %v643
        %v698 = vrcp.pop %v644
        %v699 = vrcp.pop %v645
        %v700 = vrcp.pop %v646
        %v701 = vrcp.pop %v647
        %v702 = vrcp.pop %v648
        %v703 = vrcp.pop %v649
        %v704 = vrcp.pop %v650
        %v705 = vrcp.pop %v651
        %v706 = vrcp.pop %v652
        %v707 = vrcp.pop %v653
        %v708 = vrcp.pop %v654
        %v709 = vrcp.pop %v655
        %v710 = vmul.f32 %v548, %v656
        %v711 = vmul.f32 %v549, %v657
        %v712 = vmul.f32 %v550, %v658
        %v713 = vmul.f32 %v551, %v659
        %v714 = vmul.f32 %v552, %v660
        %v715 = vmul.f32 %v553, %v661
        %v716 = vmul.f32 %v554, %v662
        %v717 = vmul.f32 %v555, %v663
        %v718 = vmul.f32 %v556, %v664
        %v719 = vmul.f32 %v557, %v665
        %v720 = vmul.f32 %v558, %v666
        %v721 = vmul.f32 %v559, %v667
        %v722 = vmul.f32 %v560, %v668
        %v723 = vmul.f32 %v561, %v669
        %v724 = vmul.f32 %v562, %v670
        %v725 = vmul.f32 %v563, %v671
        %v726 = vmul.f32 %v564, %v672
        %v727 = vmul.f32 %v565, %v673
        %v728 = vmul.f32 %v566, %v674
        %v729 = vmul.f32 %v567, %v675
        %v730 = vmul.f32 %v568, %v676
        %v731 = vmul.f32 %v569, %v677
        %v732 = vmul.f32 %v570, %v678
        %v733 = vmul.f32 %v571, %v679
        %v734 = vmul.f32 %v572, %v680
        %v735 = vmul.f32 %v573, %v681
        %v736 = vmul.f32 %v574, %v682
        %v737 = vmul.f32 %v575, %v683
        %v738 = vmul.f32 %v576, %v684
        %v739 = vmul.f32 %v577, %v685
        %v740 = vmul.f32 %v578, %v686
        %v741 = vmul.f32 %v579, %v687
        %v742 = vmul.f32 %v580, %v688
        %v743 = vmul.f32 %v581, %v689
        %v744 = vmul.f32 %v582, %v690
        %v745 = vmul.f32 %v583, %v691
        %v746 = vmul.f32 %v584, %v692
        %v747 = vmul.f32 %v585, %v693
        %v748 = vmul.f32 %v586, %v694
        %v749 = vmul.f32 %v587, %v695
        %v750 = vmul.f32 %v588, %v696
        %v751 = vmul.f32 %v589, %v697
        %v752 = vmul.f32 %v590, %v698
        %v753 = vmul.f32 %v591, %v699
        %v754 = vmul.f32 %v592, %v700
        %v755 = vmul.f32 %v593, %v701
        %v756 = vmul.f32 %v594, %v702
        %v757 = vmul.f32 %v595, %v703
        %v758 = vmul.f32 %v596, %v704
        %v759 = vmul.f32 %v597, %v705
        %v760 = vmul.f32 %v598, %v706
        %v761 = vmul.f32 %v599, %v707
        %v762 = vmul.f32 %v600, %v708
        %v763 = vmul.f32 %v601, %v709
        %vm764 = vcmask 31744
        %765 = vst.msk [vmem:[#allocation2] sm:$0xff] %vm764, %v710
        %766 = vst.msk [vmem:[#allocation2 + $0x8] sm:$0xff] %vm764, %v711
        %767 = vst.msk [vmem:[#allocation2 + $0x10] sm:$0xff] %vm764, %v713
        %768 = vst.msk [vmem:[#allocation2 + $0x18] sm:$0xff] %vm764, %v714
        %769 = vst.msk [vmem:[#allocation2 + $0x20] sm:$0xff] %vm764, %v716
        %770 = vst.msk [vmem:[#allocation2 + $0x28] sm:$0xff] %vm764, %v717
        %771 = vst.msk [vmem:[#allocation2 + $0x30] sm:$0xff] %vm764, %v719
        %772 = vst.msk [vmem:[#allocation2 + $0x38] sm:$0xff] %vm764, %v720
        %773 = vst.msk [vmem:[#allocation2 + $0x40] sm:$0xff] %vm764, %v722
        %774 = vst.msk [vmem:[#allocation2 + $0x48] sm:$0xff] %vm764, %v723
        %775 = vst.msk [vmem:[#allocation2 + $0x50] sm:$0xff] %vm764, %v725
        %776 = vst.msk [vmem:[#allocation2 + $0x58] sm:$0xff] %vm764, %v726
        %777 = vst.msk [vmem:[#allocation2 + $0x60] sm:$0xff] %vm764, %v728
        %778 = vst.msk [vmem:[#allocation2 + $0x68] sm:$0xff] %vm764, %v729
        %779 = vst.msk [vmem:[#allocation2 + $0x70] sm:$0xff] %vm764, %v731
        %780 = vst.msk [vmem:[#allocation2 + $0x78] sm:$0xff] %vm764, %v732
        %781 = vst.msk [vmem:[#allocation2 + $0x80] sm:$0xff] %vm764, %v734
        %782 = vst.msk [vmem:[#allocation2 + $0x88] sm:$0xff] %vm764, %v735
        %783 = vst.msk [vmem:[#allocation2 + $0x90] sm:$0xff] %vm764, %v737
        %784 = vst.msk [vmem:[#allocation2 + $0x98] sm:$0xff] %vm764, %v738
        %785 = vst.msk [vmem:[#allocation2 + $0xa0] sm:$0xff] %vm764, %v740
        %786 = vst.msk [vmem:[#allocation2 + $0xa8] sm:$0xff] %vm764, %v741
        %787 = vst.msk [vmem:[#allocation2 + $0xb0] sm:$0xff] %vm764, %v743
        %788 = vst.msk [vmem:[#allocation2 + $0xb8] sm:$0xff] %vm764, %v744
        %789 = vst.msk [vmem:[#allocation2 + $0xc0] sm:$0xff] %vm764, %v746
        %790 = vst.msk [vmem:[#allocation2 + $0xc8] sm:$0xff] %vm764, %v747
        %791 = vst.msk [vmem:[#allocation2 + $0xd0] sm:$0xff] %vm764, %v749
        %792 = vst.msk [vmem:[#allocation2 + $0xd8] sm:$0xff] %vm764, %v750
        %793 = vst.msk [vmem:[#allocation2 + $0xe0] sm:$0xff] %vm764, %v752
        %794 = vst.msk [vmem:[#allocation2 + $0xe8] sm:$0xff] %vm764, %v753
        %795 = vst.msk [vmem:[#allocation2 + $0xf0] sm:$0xff] %vm764, %v755
        %796 = vst.msk [vmem:[#allocation2 + $0xf8] sm:$0xff] %vm764, %v756
        %vm845 = vcmask 1046528
        %v846 = vrot.slane %v710, 1
        %v847 = vrot.slane %v711, 1
        %v848 = vsel %vm845, %v846, %v847
        %v849 = vrot.slane %v712, 1
        %v850 = vsel %vm845, %v847, %v849
        %v851 = vrot.slane %v713, 1
        %v852 = vrot.slane %v714, 1
        %v853 = vsel %vm845, %v851, %v852
        %v854 = vrot.slane %v715, 1
        %v855 = vsel %vm845, %v852, %v854
        %v856 = vrot.slane %v716, 1
        %v857 = vrot.slane %v717, 1
        %v858 = vsel %vm845, %v856, %v857
        %v859 = vrot.slane %v718, 1
        %v860 = vsel %vm845, %v857, %v859
        %v861 = vrot.slane %v719, 1
        %v862 = vrot.slane %v720, 1
        %v863 = vsel %vm845, %v861, %v862
        %v864 = vrot.slane %v721, 1
        %v865 = vsel %vm845, %v862, %v864
        %v866 = vrot.slane %v722, 1
        %v867 = vrot.slane %v723, 1
        %v868 = vsel %vm845, %v866, %v867
        %v869 = vrot.slane %v724, 1
        %v870 = vsel %vm845, %v867, %v869
        %v871 = vrot.slane %v725, 1
        %v872 = vrot.slane %v726, 1
        %v873 = vsel %vm845, %v871, %v872
        %v874 = vrot.slane %v727, 1
        %v875 = vsel %vm845, %v872, %v874
        %v876 = vrot.slane %v728, 1
        %v877 = vrot.slane %v729, 1
        %v878 = vsel %vm845, %v876, %v877
        %v879 = vrot.slane %v730, 1
        %v880 = vsel %vm845, %v877, %v879
        %v881 = vrot.slane %v731, 1
        %v882 = vrot.slane %v732, 1
        %v883 = vsel %vm845, %v881, %v882
        %v884 = vrot.slane %v733, 1
        %v885 = vsel %vm845, %v882, %v884
        %v886 = vrot.slane %v734, 1
        %v887 = vrot.slane %v735, 1
        %v888 = vsel %vm845, %v886, %v887
        %v889 = vrot.slane %v736, 1
        %v890 = vsel %vm845, %v887, %v889
        %v891 = vrot.slane %v737, 1
        %v892 = vrot.slane %v738, 1
        %v893 = vsel %vm845, %v891, %v892
        %v894 = vrot.slane %v739, 1
        %v895 = vsel %vm845, %v892, %v894
        %v896 = vrot.slane %v740, 1
        %v897 = vrot.slane %v741, 1
        %v898 = vsel %vm845, %v896, %v897
        %v899 = vrot.slane %v742, 1
        %v900 = vsel %vm845, %v897, %v899
        %v901 = vrot.slane %v743, 1
        %v902 = vrot.slane %v744, 1
        %v903 = vsel %vm845, %v901, %v902
        %v904 = vrot.slane %v745, 1
        %v905 = vsel %vm845, %v902, %v904
        %v906 = vrot.slane %v746, 1
        %v907 = vrot.slane %v747, 1
        %v908 = vsel %vm845, %v906, %v907
        %v909 = vrot.slane %v748, 1
        %v910 = vsel %vm845, %v907, %v909
        %v911 = vrot.slane %v749, 1
        %v912 = vrot.slane %v750, 1
        %v913 = vsel %vm845, %v911, %v912
        %v914 = vrot.slane %v751, 1
        %v915 = vsel %vm845, %v912, %v914
        %v916 = vrot.slane %v752, 1
        %v917 = vrot.slane %v753, 1
        %v918 = vsel %vm845, %v916, %v917
        %v919 = vrot.slane %v754, 1
        %v920 = vsel %vm845, %v917, %v919
        %v921 = vrot.slane %v755, 1
        %v922 = vrot.slane %v756, 1
        %v923 = vsel %vm845, %v921, %v922
        %v924 = vrot.slane %v757, 1
        %v925 = vsel %vm845, %v922, %v924
        %926 = vrot.lane.b32.xlu0 %v848, 4
        %v927 = vpop.permute.xlu0 %926
        %928 = vrot.lane.b32.xlu0 %v850, 4
        %v929 = vpop.permute.xlu0 %928
        %930 = vrot.lane.b32.xlu0 %v853, 4
        %v931 = vpop.permute.xlu0 %930
        %932 = vrot.lane.b32.xlu0 %v855, 4
        %v933 = vpop.permute.xlu0 %932
        %934 = vrot.lane.b32.xlu0 %v858, 4
        %v935 = vpop.permute.xlu0 %934
        %936 = vrot.lane.b32.xlu0 %v860, 4
        %v937 = vpop.permute.xlu0 %936
        %938 = vrot.lane.b32.xlu0 %v863, 4
        %v939 = vpop.permute.xlu0 %938
        %940 = vrot.lane.b32.xlu0 %v865, 4
        %v941 = vpop.permute.xlu0 %940
        %942 = vrot.lane.b32.xlu0 %v868, 4
        %v943 = vpop.permute.xlu0 %942
        %944 = vrot.lane.b32.xlu0 %v870, 4
        %v945 = vpop.permute.xlu0 %944
        %946 = vrot.lane.b32.xlu0 %v873, 4
        %v947 = vpop.permute.xlu0 %946
        %948 = vrot.lane.b32.xlu0 %v875, 4
        %v949 = vpop.permute.xlu0 %948
        %950 = vrot.lane.b32.xlu0 %v878, 4
        %v951 = vpop.permute.xlu0 %950
        %952 = vrot.lane.b32.xlu0 %v880, 4
        %v953 = vpop.permute.xlu0 %952
        %954 = vrot.lane.b32.xlu0 %v883, 4
        %v955 = vpop.permute.xlu0 %954
        %956 = vrot.lane.b32.xlu0 %v885, 4
        %v957 = vpop.permute.xlu0 %956
        %958 = vrot.lane.b32.xlu0 %v888, 4
        %v959 = vpop.permute.xlu0 %958
        %960 = vrot.lane.b32.xlu0 %v890, 4
        %v961 = vpop.permute.xlu0 %960
        %962 = vrot.lane.b32.xlu0 %v893, 4
        %v963 = vpop.permute.xlu0 %962
        %964 = vrot.lane.b32.xlu0 %v895, 4
        %v965 = vpop.permute.xlu0 %964
        %966 = vrot.lane.b32.xlu0 %v898, 4
        %v967 = vpop.permute.xlu0 %966
        %968 = vrot.lane.b32.xlu0 %v900, 4
        %v969 = vpop.permute.xlu0 %968
        %970 = vrot.lane.b32.xlu0 %v903, 4
        %v971 = vpop.permute.xlu0 %970
        %972 = vrot.lane.b32.xlu0 %v905, 4
        %v973 = vpop.permute.xlu0 %972
        %974 = vrot.lane.b32.xlu0 %v908, 4
        %v975 = vpop.permute.xlu0 %974
        %976 = vrot.lane.b32.xlu0 %v910, 4
        %v977 = vpop.permute.xlu0 %976
        %978 = vrot.lane.b32.xlu0 %v913, 4
        %v979 = vpop.permute.xlu0 %978
        %980 = vrot.lane.b32.xlu0 %v915, 4
        %v981 = vpop.permute.xlu0 %980
        %982 = vrot.lane.b32.xlu0 %v918, 4
        %v983 = vpop.permute.xlu0 %982
        %984 = vrot.lane.b32.xlu0 %v920, 4
        %v985 = vpop.permute.xlu0 %984
        %986 = vrot.lane.b32.xlu0 %v923, 4
        %v987 = vpop.permute.xlu0 %986
        %988 = vrot.lane.b32.xlu0 %v925, 4
        %v989 = vpop.permute.xlu0 %988
        %vm1022 = vcmask 64544
        %1023 = vst.msk [vmem:[#allocation2] sm:$0xff] %vm1022, %v927
        %1024 = vst.msk [vmem:[#allocation2 + $0x8] sm:$0xff] %vm1022, %v929
        %1025 = vst.msk [vmem:[#allocation2 + $0x10] sm:$0xff] %vm1022, %v931
        %1026 = vst.msk [vmem:[#allocation2 + $0x18] sm:$0xff] %vm1022, %v933
        %1027 = vst.msk [vmem:[#allocation2 + $0x20] sm:$0xff] %vm1022, %v935
        %1028 = vst.msk [vmem:[#allocation2 + $0x28] sm:$0xff] %vm1022, %v937
        %1029 = vst.msk [vmem:[#allocation2 + $0x30] sm:$0xff] %vm1022, %v939
        %1030 = vst.msk [vmem:[#allocation2 + $0x38] sm:$0xff] %vm1022, %v941
        %1031 = vst.msk [vmem:[#allocation2 + $0x40] sm:$0xff] %vm1022, %v943
        %1032 = vst.msk [vmem:[#allocation2 + $0x48] sm:$0xff] %vm1022, %v945
        %1033 = vst.msk [vmem:[#allocation2 + $0x50] sm:$0xff] %vm1022, %v947
        %1034 = vst.msk [vmem:[#allocation2 + $0x58] sm:$0xff] %vm1022, %v949
        %1035 = vst.msk [vmem:[#allocation2 + $0x60] sm:$0xff] %vm1022, %v951
        %1036 = vst.msk [vmem:[#allocation2 + $0x68] sm:$0xff] %vm1022, %v953
        %1037 = vst.msk [vmem:[#allocation2 + $0x70] sm:$0xff] %vm1022, %v955
        %1038 = vst.msk [vmem:[#allocation2 + $0x78] sm:$0xff] %vm1022, %v957
        %1039 = vst.msk [vmem:[#allocation2 + $0x80] sm:$0xff] %vm1022, %v959
        %1040 = vst.msk [vmem:[#allocation2 + $0x88] sm:$0xff] %vm1022, %v961
        %1041 = vst.msk [vmem:[#allocation2 + $0x90] sm:$0xff] %vm1022, %v963
        %1042 = vst.msk [vmem:[#allocation2 + $0x98] sm:$0xff] %vm1022, %v965
        %1043 = vst.msk [vmem:[#allocation2 + $0xa0] sm:$0xff] %vm1022, %v967
        %1044 = vst.msk [vmem:[#allocation2 + $0xa8] sm:$0xff] %vm1022, %v969
        %1045 = vst.msk [vmem:[#allocation2 + $0xb0] sm:$0xff] %vm1022, %v971
        %1046 = vst.msk [vmem:[#allocation2 + $0xb8] sm:$0xff] %vm1022, %v973
        %1047 = vst.msk [vmem:[#allocation2 + $0xc0] sm:$0xff] %vm1022, %v975
        %1048 = vst.msk [vmem:[#allocation2 + $0xc8] sm:$0xff] %vm1022, %v977
        %1049 = vst.msk [vmem:[#allocation2 + $0xd0] sm:$0xff] %vm1022, %v979
        %1050 = vst.msk [vmem:[#allocation2 + $0xd8] sm:$0xff] %vm1022, %v981
        %1051 = vst.msk [vmem:[#allocation2 + $0xe0] sm:$0xff] %vm1022, %v983
        %1052 = vst.msk [vmem:[#allocation2 + $0xe8] sm:$0xff] %vm1022, %v985
        %1053 = vst.msk [vmem:[#allocation2 + $0xf0] sm:$0xff] %vm1022, %v987
        %1054 = vst.msk [vmem:[#allocation2 + $0xf8] sm:$0xff] %vm1022, %v989
        %vm1055 = vcmask 1045504
        %v1056 = vrot.slane %v710, 2
        %v1057 = vrot.slane %v711, 2
        %v1058 = vsel %vm1055, %v1056, %v1057
        %v1059 = vrot.slane %v712, 2
        %v1060 = vsel %vm1055, %v1057, %v1059
        %v1061 = vrot.slane %v713, 2
        %v1062 = vrot.slane %v714, 2
        %v1063 = vsel %vm1055, %v1061, %v1062
        %v1064 = vrot.slane %v715, 2
        %v1065 = vsel %vm1055, %v1062, %v1064
        %v1066 = vrot.slane %v716, 2
        %v1067 = vrot.slane %v717, 2
        %v1068 = vsel %vm1055, %v1066, %v1067
        %v1069 = vrot.slane %v718, 2
        %v1070 = vsel %vm1055, %v1067, %v1069
        %v1071 = vrot.slane %v719, 2
        %v1072 = vrot.slane %v720, 2
        %v1073 = vsel %vm1055, %v1071, %v1072
        %v1074 = vrot.slane %v721, 2
        %v1075 = vsel %vm1055, %v1072, %v1074
        %v1076 = vrot.slane %v722, 2
        %v1077 = vrot.slane %v723, 2
        %v1078 = vsel %vm1055, %v1076, %v1077
        %v1079 = vrot.slane %v724, 2
        %v1080 = vsel %vm1055, %v1077, %v1079
        %v1081 = vrot.slane %v725, 2
        %v1082 = vrot.slane %v726, 2
        %v1083 = vsel %vm1055, %v1081, %v1082
        %v1084 = vrot.slane %v727, 2
        %v1085 = vsel %vm1055, %v1082, %v1084
        %v1086 = vrot.slane %v728, 2
        %v1087 = vrot.slane %v729, 2
        %v1088 = vsel %vm1055, %v1086, %v1087
        %v1089 = vrot.slane %v730, 2
        %v1090 = vsel %vm1055, %v1087, %v1089
        %v1091 = vrot.slane %v731, 2
        %v1092 = vrot.slane %v732, 2
        %v1093 = vsel %vm1055, %v1091, %v1092
        %v1094 = vrot.slane %v733, 2
        %v1095 = vsel %vm1055, %v1092, %v1094
        %v1096 = vrot.slane %v734, 2
        %v1097 = vrot.slane %v735, 2
        %v1098 = vsel %vm1055, %v1096, %v1097
        %v1099 = vrot.slane %v736, 2
        %v1100 = vsel %vm1055, %v1097, %v1099
        %v1101 = vrot.slane %v737, 2
        %v1102 = vrot.slane %v738, 2
        %v1103 = vsel %vm1055, %v1101, %v1102
        %v1104 = vrot.slane %v739, 2
        %v1105 = vsel %vm1055, %v1102, %v1104
        %v1106 = vrot.slane %v740, 2
        %v1107 = vrot.slane %v741, 2
        %v1108 = vsel %vm1055, %v1106, %v1107
        %v1109 = vrot.slane %v742, 2
        %v1110 = vsel %vm1055, %v1107, %v1109
        %v1111 = vrot.slane %v743, 2
        %v1112 = vrot.slane %v744, 2
        %v1113 = vsel %vm1055, %v1111, %v1112
        %v1114 = vrot.slane %v745, 2
        %v1115 = vsel %vm1055, %v1112, %v1114
        %v1116 = vrot.slane %v746, 2
        %v1117 = vrot.slane %v747, 2
        %v1118 = vsel %vm1055, %v1116, %v1117
        %v1119 = vrot.slane %v748, 2
        %v1120 = vsel %vm1055, %v1117, %v1119
        %v1121 = vrot.slane %v749, 2
        %v1122 = vrot.slane %v750, 2
        %v1123 = vsel %vm1055, %v1121, %v1122
        %v1124 = vrot.slane %v751, 2
        %v1125 = vsel %vm1055, %v1122, %v1124
        %v1126 = vrot.slane %v752, 2
        %v1127 = vrot.slane %v753, 2
        %v1128 = vsel %vm1055, %v1126, %v1127
        %v1129 = vrot.slane %v754, 2
        %v1130 = vsel %vm1055, %v1127, %v1129
        %v1131 = vrot.slane %v755, 2
        %v1132 = vrot.slane %v756, 2
        %v1133 = vsel %vm1055, %v1131, %v1132
        %v1134 = vrot.slane %v757, 2
        %v1135 = vsel %vm1055, %v1132, %v1134
        %1136 = vrot.lane.b32.xlu0 %v1058, 8
        %v1137 = vpop.permute.xlu0 %1136
        %1138 = vrot.lane.b32.xlu0 %v1060, 8
        %v1139 = vpop.permute.xlu0 %1138
        %1140 = vrot.lane.b32.xlu0 %v1063, 8
        %v1141 = vpop.permute.xlu0 %1140
        %1142 = vrot.lane.b32.xlu0 %v1065, 8
        %v1143 = vpop.permute.xlu0 %1142
        %1144 = vrot.lane.b32.xlu0 %v1068, 8
        %v1145 = vpop.permute.xlu0 %1144
        %1146 = vrot.lane.b32.xlu0 %v1070, 8
        %v1147 = vpop.permute.xlu0 %1146
        %1148 = vrot.lane.b32.xlu0 %v1073, 8
        %v1149 = vpop.permute.xlu0 %1148
        %1150 = vrot.lane.b32.xlu0 %v1075, 8
        %v1151 = vpop.permute.xlu0 %1150
        %1152 = vrot.lane.b32.xlu0 %v1078, 8
        %v1153 = vpop.permute.xlu0 %1152
        %1154 = vrot.lane.b32.xlu0 %v1080, 8
        %v1155 = vpop.permute.xlu0 %1154
        %1156 = vrot.lane.b32.xlu0 %v1083, 8
        %v1157 = vpop.permute.xlu0 %1156
        %1158 = vrot.lane.b32.xlu0 %v1085, 8
        %v1159 = vpop.permute.xlu0 %1158
        %1160 = vrot.lane.b32.xlu0 %v1088, 8
        %v1161 = vpop.permute.xlu0 %1160
        %1162 = vrot.lane.b32.xlu0 %v1090, 8
        %v1163 = vpop.permute.xlu0 %1162
        %1164 = vrot.lane.b32.xlu0 %v1093, 8
        %v1165 = vpop.permute.xlu0 %1164
        %1166 = vrot.lane.b32.xlu0 %v1095, 8
        %v1167 = vpop.permute.xlu0 %1166
        %1168 = vrot.lane.b32.xlu0 %v1098, 8
        %v1169 = vpop.permute.xlu0 %1168
        %1170 = vrot.lane.b32.xlu0 %v1100, 8
        %v1171 = vpop.permute.xlu0 %1170
        %1172 = vrot.lane.b32.xlu0 %v1103, 8
        %v1173 = vpop.permute.xlu0 %1172
        %1174 = vrot.lane.b32.xlu0 %v1105, 8
        %v1175 = vpop.permute.xlu0 %1174
        %1176 = vrot.lane.b32.xlu0 %v1108, 8
        %v1177 = vpop.permute.xlu0 %1176
        %1178 = vrot.lane.b32.xlu0 %v1110, 8
        %v1179 = vpop.permute.xlu0 %1178
        %1180 = vrot.lane.b32.xlu0 %v1113, 8
        %v1181 = vpop.permute.xlu0 %1180
        %1182 = vrot.lane.b32.xlu0 %v1115, 8
        %v1183 = vpop.permute.xlu0 %1182
        %1184 = vrot.lane.b32.xlu0 %v1118, 8
        %v1185 = vpop.permute.xlu0 %1184
        %1186 = vrot.lane.b32.xlu0 %v1120, 8
        %v1187 = vpop.permute.xlu0 %1186
        %1188 = vrot.lane.b32.xlu0 %v1123, 8
        %v1189 = vpop.permute.xlu0 %1188
        %1190 = vrot.lane.b32.xlu0 %v1125, 8
        %v1191 = vpop.permute.xlu0 %1190
        %1192 = vrot.lane.b32.xlu0 %v1128, 8
        %v1193 = vpop.permute.xlu0 %1192
        %1194 = vrot.lane.b32.xlu0 %v1130, 8
        %v1195 = vpop.permute.xlu0 %1194
        %1196 = vrot.lane.b32.xlu0 %v1133, 8
        %v1197 = vpop.permute.xlu0 %1196
        %1198 = vrot.lane.b32.xlu0 %v1135, 8
        %v1199 = vpop.permute.xlu0 %1198
        %vm1232 = vcmask 97344
        %1233 = vst.msk [vmem:[#allocation2] sm:$0xff] %vm1232, %v1137
        %1234 = vst.msk [vmem:[#allocation2 + $0x8] sm:$0xff] %vm1232, %v1139
        %1235 = vst.msk [vmem:[#allocation2 + $0x10] sm:$0xff] %vm1232, %v1141
        %1236 = vst.msk [vmem:[#allocation2 + $0x18] sm:$0xff] %vm1232, %v1143
        %1237 = vst.msk [vmem:[#allocation2 + $0x20] sm:$0xff] %vm1232, %v1145
        %1238 = vst.msk [vmem:[#allocation2 + $0x28] sm:$0xff] %vm1232, %v1147
        %1239 = vst.msk [vmem:[#allocation2 + $0x30] sm:$0xff] %vm1232, %v1149
        %1240 = vst.msk [vmem:[#allocation2 + $0x38] sm:$0xff] %vm1232, %v1151
        %1241 = vst.msk [vmem:[#allocation2 + $0x40] sm:$0xff] %vm1232, %v1153
        %1242 = vst.msk [vmem:[#allocation2 + $0x48] sm:$0xff] %vm1232, %v1155
        %1243 = vst.msk [vmem:[#allocation2 + $0x50] sm:$0xff] %vm1232, %v1157
        %1244 = vst.msk [vmem:[#allocation2 + $0x58] sm:$0xff] %vm1232, %v1159
        %1245 = vst.msk [vmem:[#allocation2 + $0x60] sm:$0xff] %vm1232, %v1161
        %1246 = vst.msk [vmem:[#allocation2 + $0x68] sm:$0xff] %vm1232, %v1163
        %1247 = vst.msk [vmem:[#allocation2 + $0x70] sm:$0xff] %vm1232, %v1165
        %1248 = vst.msk [vmem:[#allocation2 + $0x78] sm:$0xff] %vm1232, %v1167
        %1249 = vst.msk [vmem:[#allocation2 + $0x80] sm:$0xff] %vm1232, %v1169
        %1250 = vst.msk [vmem:[#allocation2 + $0x88] sm:$0xff] %vm1232, %v1171
        %1251 = vst.msk [vmem:[#allocation2 + $0x90] sm:$0xff] %vm1232, %v1173
        %1252 = vst.msk [vmem:[#allocation2 + $0x98] sm:$0xff] %vm1232, %v1175
        %1253 = vst.msk [vmem:[#allocation2 + $0xa0] sm:$0xff] %vm1232, %v1177
        %1254 = vst.msk [vmem:[#allocation2 + $0xa8] sm:$0xff] %vm1232, %v1179
        %1255 = vst.msk [vmem:[#allocation2 + $0xb0] sm:$0xff] %vm1232, %v1181
        %1256 = vst.msk [vmem:[#allocation2 + $0xb8] sm:$0xff] %vm1232, %v1183
        %1257 = vst.msk [vmem:[#allocation2 + $0xc0] sm:$0xff] %vm1232, %v1185
        %1258 = vst.msk [vmem:[#allocation2 + $0xc8] sm:$0xff] %vm1232, %v1187
        %1259 = vst.msk [vmem:[#allocation2 + $0xd0] sm:$0xff] %vm1232, %v1189
        %1260 = vst.msk [vmem:[#allocation2 + $0xd8] sm:$0xff] %vm1232, %v1191
        %1261 = vst.msk [vmem:[#allocation2 + $0xe0] sm:$0xff] %vm1232, %v1193
        %1262 = vst.msk [vmem:[#allocation2 + $0xe8] sm:$0xff] %vm1232, %v1195
        %1263 = vst.msk [vmem:[#allocation2 + $0xf0] sm:$0xff] %vm1232, %v1197
        %1264 = vst.msk [vmem:[#allocation2 + $0xf8] sm:$0xff] %vm1232, %v1199
        %1267 = vrot.lane.b32.xlu0 %v713, 12
        %v1268 = vpop.permute.xlu0 %1267
        %1269 = vrot.lane.b32.xlu0 %v714, 12
        %v1270 = vpop.permute.xlu0 %1269
        %1271 = vrot.lane.b32.xlu0 %v716, 12
        %v1272 = vpop.permute.xlu0 %1271
        %1273 = vrot.lane.b32.xlu0 %v717, 12
        %v1274 = vpop.permute.xlu0 %1273
        %1275 = vrot.lane.b32.xlu0 %v719, 12
        %v1276 = vpop.permute.xlu0 %1275
        %1277 = vrot.lane.b32.xlu0 %v720, 12
        %v1278 = vpop.permute.xlu0 %1277
        %1279 = vrot.lane.b32.xlu0 %v722, 12
        %v1280 = vpop.permute.xlu0 %1279
        %1281 = vrot.lane.b32.xlu0 %v723, 12
        %v1282 = vpop.permute.xlu0 %1281
        %1283 = vrot.lane.b32.xlu0 %v725, 12
        %v1284 = vpop.permute.xlu0 %1283
        %1285 = vrot.lane.b32.xlu0 %v726, 12
        %v1286 = vpop.permute.xlu0 %1285
        %1287 = vrot.lane.b32.xlu0 %v728, 12
        %v1288 = vpop.permute.xlu0 %1287
        %1289 = vrot.lane.b32.xlu0 %v729, 12
        %v1290 = vpop.permute.xlu0 %1289
        %1291 = vrot.lane.b32.xlu0 %v731, 12
        %v1292 = vpop.permute.xlu0 %1291
        %1293 = vrot.lane.b32.xlu0 %v732, 12
        %v1294 = vpop.permute.xlu0 %1293
        %1295 = vrot.lane.b32.xlu0 %v734, 12
        %v1296 = vpop.permute.xlu0 %1295
        %1297 = vrot.lane.b32.xlu0 %v735, 12
        %v1298 = vpop.permute.xlu0 %1297
        %1299 = vrot.lane.b32.xlu0 %v737, 12
        %v1300 = vpop.permute.xlu0 %1299
        %1301 = vrot.lane.b32.xlu0 %v738, 12
        %v1302 = vpop.permute.xlu0 %1301
        %1303 = vrot.lane.b32.xlu0 %v740, 12
        %v1304 = vpop.permute.xlu0 %1303
        %1305 = vrot.lane.b32.xlu0 %v741, 12
        %v1306 = vpop.permute.xlu0 %1305
        %1307 = vrot.lane.b32.xlu0 %v743, 12
        %v1308 = vpop.permute.xlu0 %1307
        %1309 = vrot.lane.b32.xlu0 %v744, 12
        %v1310 = vpop.permute.xlu0 %1309
        %1311 = vrot.lane.b32.xlu0 %v746, 12
        %v1312 = vpop.permute.xlu0 %1311
        %1313 = vrot.lane.b32.xlu0 %v747, 12
        %v1314 = vpop.permute.xlu0 %1313
        %1315 = vrot.lane.b32.xlu0 %v749, 12
        %v1316 = vpop.permute.xlu0 %1315
        %1317 = vrot.lane.b32.xlu0 %v750, 12
        %v1318 = vpop.permute.xlu0 %1317
        %1319 = vrot.lane.b32.xlu0 %v752, 12
        %v1320 = vpop.permute.xlu0 %1319
        %1321 = vrot.lane.b32.xlu0 %v753, 12
        %v1322 = vpop.permute.xlu0 %1321
        %1323 = vrot.lane.b32.xlu0 %v755, 12
        %v1324 = vpop.permute.xlu0 %1323
        %1325 = vrot.lane.b32.xlu0 %v756, 12
        %v1326 = vpop.permute.xlu0 %1325
        %1327 = vrot.lane.b32.xlu0 %v758, 12
        %v1328 = vpop.permute.xlu0 %1327
        %1329 = vrot.lane.b32.xlu0 %v759, 12
        %v1330 = vpop.permute.xlu0 %1329
        %vm1363 = vcmask 130144
        %1364 = vst.msk [vmem:[#allocation2] sm:$0xff] %vm1363, %v1268
        %1365 = vst.msk [vmem:[#allocation2 + $0x8] sm:$0xff] %vm1363, %v1270
        %1366 = vst.msk [vmem:[#allocation2 + $0x10] sm:$0xff] %vm1363, %v1272
        %1367 = vst.msk [vmem:[#allocation2 + $0x18] sm:$0xff] %vm1363, %v1274
        %1368 = vst.msk [vmem:[#allocation2 + $0x20] sm:$0xff] %vm1363, %v1276
        %1369 = vst.msk [vmem:[#allocation2 + $0x28] sm:$0xff] %vm1363, %v1278
        %1370 = vst.msk [vmem:[#allocation2 + $0x30] sm:$0xff] %vm1363, %v1280
        %1371 = vst.msk [vmem:[#allocation2 + $0x38] sm:$0xff] %vm1363, %v1282
        %1372 = vst.msk [vmem:[#allocation2 + $0x40] sm:$0xff] %vm1363, %v1284
        %1373 = vst.msk [vmem:[#allocation2 + $0x48] sm:$0xff] %vm1363, %v1286
        %1374 = vst.msk [vmem:[#allocation2 + $0x50] sm:$0xff] %vm1363, %v1288
        %1375 = vst.msk [vmem:[#allocation2 + $0x58] sm:$0xff] %vm1363, %v1290
        %1376 = vst.msk [vmem:[#allocation2 + $0x60] sm:$0xff] %vm1363, %v1292
        %1377 = vst.msk [vmem:[#allocation2 + $0x68] sm:$0xff] %vm1363, %v1294
        %1378 = vst.msk [vmem:[#allocation2 + $0x70] sm:$0xff] %vm1363, %v1296
        %1379 = vst.msk [vmem:[#allocation2 + $0x78] sm:$0xff] %vm1363, %v1298
        %1380 = vst.msk [vmem:[#allocation2 + $0x80] sm:$0xff] %vm1363, %v1300
        %1381 = vst.msk [vmem:[#allocation2 + $0x88] sm:$0xff] %vm1363, %v1302
        %1382 = vst.msk [vmem:[#allocation2 + $0x90] sm:$0xff] %vm1363, %v1304
        %1383 = vst.msk [vmem:[#allocation2 + $0x98] sm:$0xff] %vm1363, %v1306
        %1384 = vst.msk [vmem:[#allocation2 + $0xa0] sm:$0xff] %vm1363, %v1308
        %1385 = vst.msk [vmem:[#allocation2 + $0xa8] sm:$0xff] %vm1363, %v1310
        %1386 = vst.msk [vmem:[#allocation2 + $0xb0] sm:$0xff] %vm1363, %v1312
        %1387 = vst.msk [vmem:[#allocation2 + $0xb8] sm:$0xff] %vm1363, %v1314
        %1388 = vst.msk [vmem:[#allocation2 + $0xc0] sm:$0xff] %vm1363, %v1316
        %1389 = vst.msk [vmem:[#allocation2 + $0xc8] sm:$0xff] %vm1363, %v1318
        %1390 = vst.msk [vmem:[#allocation2 + $0xd0] sm:$0xff] %vm1363, %v1320
        %1391 = vst.msk [vmem:[#allocation2 + $0xd8] sm:$0xff] %vm1363, %v1322
        %1392 = vst.msk [vmem:[#allocation2 + $0xe0] sm:$0xff] %vm1363, %v1324
        %1393 = vst.msk [vmem:[#allocation2 + $0xe8] sm:$0xff] %vm1363, %v1326
        %1394 = vst.msk [vmem:[#allocation2 + $0xf0] sm:$0xff] %vm1363, %v1328
        %1395 = vst.msk [vmem:[#allocation2 + $0xf8] sm:$0xff] %vm1363, %v1330
        %v1397 = vrot.slane %v758, 1
        %v1398 = vrot.slane %v759, 1
        %v1399 = vsel %vm845, %v1397, %v1398
        %v1400 = vrot.slane %v760, 1
        %v1401 = vsel %vm845, %v1398, %v1400
        %1402 = vrot.lane.b32.xlu0 %v853, 16
        %v1403 = vpop.permute.xlu0 %1402
        %1404 = vrot.lane.b32.xlu0 %v855, 16
        %v1405 = vpop.permute.xlu0 %1404
        %1406 = vrot.lane.b32.xlu0 %v858, 16
        %v1407 = vpop.permute.xlu0 %1406
        %1408 = vrot.lane.b32.xlu0 %v860, 16
        %v1409 = vpop.permute.xlu0 %1408
        %1410 = vrot.lane.b32.xlu0 %v863, 16
        %v1411 = vpop.permute.xlu0 %1410
        %1412 = vrot.lane.b32.xlu0 %v865, 16
        %v1413 = vpop.permute.xlu0 %1412
        %1414 = vrot.lane.b32.xlu0 %v868, 16
        %v1415 = vpop.permute.xlu0 %1414
        %1416 = vrot.lane.b32.xlu0 %v870, 16
        %v1417 = vpop.permute.xlu0 %1416
        %1418 = vrot.lane.b32.xlu0 %v873, 16
        %v1419 = vpop.permute.xlu0 %1418
        %1420 = vrot.lane.b32.xlu0 %v875, 16
        %v1421 = vpop.permute.xlu0 %1420
        %1422 = vrot.lane.b32.xlu0 %v878, 16
        %v1423 = vpop.permute.xlu0 %1422
        %1424 = vrot.lane.b32.xlu0 %v880, 16
        %v1425 = vpop.permute.xlu0 %1424
        %1426 = vrot.lane.b32.xlu0 %v883, 16
        %v1427 = vpop.permute.xlu0 %1426
        %1428 = vrot.lane.b32.xlu0 %v885, 16
        %v1429 = vpop.permute.xlu0 %1428
        %1430 = vrot.lane.b32.xlu0 %v888, 16
        %v1431 = vpop.permute.xlu0 %1430
        %1432 = vrot.lane.b32.xlu0 %v890, 16
        %v1433 = vpop.permute.xlu0 %1432
        %1434 = vrot.lane.b32.xlu0 %v893, 16
        %v1435 = vpop.permute.xlu0 %1434
        %1436 = vrot.lane.b32.xlu0 %v895, 16
        %v1437 = vpop.permute.xlu0 %1436
        %1438 = vrot.lane.b32.xlu0 %v898, 16
        %v1439 = vpop.permute.xlu0 %1438
        %1440 = vrot.lane.b32.xlu0 %v900, 16
        %v1441 = vpop.permute.xlu0 %1440
        %1442 = vrot.lane.b32.xlu0 %v903, 16
        %v1443 = vpop.permute.xlu0 %1442
        %1444 = vrot.lane.b32.xlu0 %v905, 16
        %v1445 = vpop.permute.xlu0 %1444
        %1446 = vrot.lane.b32.xlu0 %v908, 16
        %v1447 = vpop.permute.xlu0 %1446
        %1448 = vrot.lane.b32.xlu0 %v910, 16
        %v1449 = vpop.permute.xlu0 %1448
        %1450 = vrot.lane.b32.xlu0 %v913, 16
        %v1451 = vpop.permute.xlu0 %1450
        %1452 = vrot.lane.b32.xlu0 %v915, 16
        %v1453 = vpop.permute.xlu0 %1452
        %1454 = vrot.lane.b32.xlu0 %v918, 16
        %v1455 = vpop.permute.xlu0 %1454
        %1456 = vrot.lane.b32.xlu0 %v920, 16
        %v1457 = vpop.permute.xlu0 %1456
        %1458 = vrot.lane.b32.xlu0 %v923, 16
        %v1459 = vpop.permute.xlu0 %1458
        %1460 = vrot.lane.b32.xlu0 %v925, 16
        %v1461 = vpop.permute.xlu0 %1460
        %1462 = vrot.lane.b32.xlu0 %v1399, 16
        %v1463 = vpop.permute.xlu0 %1462
        %1464 = vrot.lane.b32.xlu0 %v1401, 16
        %v1465 = vpop.permute.xlu0 %1464
        %vm1498 = vcmask 162944
        %1499 = vst.msk [vmem:[#allocation2] sm:$0xff] %vm1498, %v1403
        %1500 = vst.msk [vmem:[#allocation2 + $0x8] sm:$0xff] %vm1498, %v1405
        %1501 = vst.msk [vmem:[#allocation2 + $0x10] sm:$0xff] %vm1498, %v1407
        %1502 = vst.msk [vmem:[#allocation2 + $0x18] sm:$0xff] %vm1498, %v1409
        %1503 = vst.msk [vmem:[#allocation2 + $0x20] sm:$0xff] %vm1498, %v1411
        %1504 = vst.msk [vmem:[#allocation2 + $0x28] sm:$0xff] %vm1498, %v1413
        %1505 = vst.msk [vmem:[#allocation2 + $0x30] sm:$0xff] %vm1498, %v1415
        %1506 = vst.msk [vmem:[#allocation2 + $0x38] sm:$0xff] %vm1498, %v1417
        %1507 = vst.msk [vmem:[#allocation2 + $0x40] sm:$0xff] %vm1498, %v1419
        %1508 = vst.msk [vmem:[#allocation2 + $0x48] sm:$0xff] %vm1498, %v1421
        %1509 = vst.msk [vmem:[#allocation2 + $0x50] sm:$0xff] %vm1498, %v1423
        %1510 = vst.msk [vmem:[#allocation2 + $0x58] sm:$0xff] %vm1498, %v1425
        %1511 = vst.msk [vmem:[#allocation2 + $0x60] sm:$0xff] %vm1498, %v1427
        %1512 = vst.msk [vmem:[#allocation2 + $0x68] sm:$0xff] %vm1498, %v1429
        %1513 = vst.msk [vmem:[#allocation2 + $0x70] sm:$0xff] %vm1498, %v1431
        %1514 = vst.msk [vmem:[#allocation2 + $0x78] sm:$0xff] %vm1498, %v1433
        %1515 = vst.msk [vmem:[#allocation2 + $0x80] sm:$0xff] %vm1498, %v1435
        %1516 = vst.msk [vmem:[#allocation2 + $0x88] sm:$0xff] %vm1498, %v1437
        %1517 = vst.msk [vmem:[#allocation2 + $0x90] sm:$0xff] %vm1498, %v1439
        %1518 = vst.msk [vmem:[#allocation2 + $0x98] sm:$0xff] %vm1498, %v1441
        %1519 = vst.msk [vmem:[#allocation2 + $0xa0] sm:$0xff] %vm1498, %v1443
        %1520 = vst.msk [vmem:[#allocation2 + $0xa8] sm:$0xff] %vm1498, %v1445
        %1521 = vst.msk [vmem:[#allocation2 + $0xb0] sm:$0xff] %vm1498, %v1447
        %1522 = vst.msk [vmem:[#allocation2 + $0xb8] sm:$0xff] %vm1498, %v1449
        %1523 = vst.msk [vmem:[#allocation2 + $0xc0] sm:$0xff] %vm1498, %v1451
        %1524 = vst.msk [vmem:[#allocation2 + $0xc8] sm:$0xff] %vm1498, %v1453
        %1525 = vst.msk [vmem:[#allocation2 + $0xd0] sm:$0xff] %vm1498, %v1455
        %1526 = vst.msk [vmem:[#allocation2 + $0xd8] sm:$0xff] %vm1498, %v1457
        %1527 = vst.msk [vmem:[#allocation2 + $0xe0] sm:$0xff] %vm1498, %v1459
        %1528 = vst.msk [vmem:[#allocation2 + $0xe8] sm:$0xff] %vm1498, %v1461
        %1529 = vst.msk [vmem:[#allocation2 + $0xf0] sm:$0xff] %vm1498, %v1463
        %1530 = vst.msk [vmem:[#allocation2 + $0xf8] sm:$0xff] %vm1498, %v1465
        %v1531 = vrot.slane %v758, 2
        %v1532 = vrot.slane %v759, 2
        %v1533 = vsel %vm1055, %v1531, %v1532
        %v1534 = vrot.slane %v760, 2
        %v1535 = vsel %vm1055, %v1532, %v1534
        %1536 = vrot.lane.b32.xlu0 %v1063, 20
        %v1537 = vpop.permute.xlu0 %1536
        %1538 = vrot.lane.b32.xlu0 %v1065, 20
        %v1539 = vpop.permute.xlu0 %1538
        %1540 = vrot.lane.b32.xlu0 %v1068, 20
        %v1541 = vpop.permute.xlu0 %1540
        %1542 = vrot.lane.b32.xlu0 %v1070, 20
        %v1543 = vpop.permute.xlu0 %1542
        %1544 = vrot.lane.b32.xlu0 %v1073, 20
        %v1545 = vpop.permute.xlu0 %1544
        %1546 = vrot.lane.b32.xlu0 %v1075, 20
        %v1547 = vpop.permute.xlu0 %1546
        %1548 = vrot.lane.b32.xlu0 %v1078, 20
        %v1549 = vpop.permute.xlu0 %1548
        %1550 = vrot.lane.b32.xlu0 %v1080, 20
        %v1551 = vpop.permute.xlu0 %1550
        %1552 = vrot.lane.b32.xlu0 %v1083, 20
        %v1553 = vpop.permute.xlu0 %1552
        %1554 = vrot.lane.b32.xlu0 %v1085, 20
        %v1555 = vpop.permute.xlu0 %1554
        %1556 = vrot.lane.b32.xlu0 %v1088, 20
        %v1557 = vpop.permute.xlu0 %1556
        %1558 = vrot.lane.b32.xlu0 %v1090, 20
        %v1559 = vpop.permute.xlu0 %1558
        %1560 = vrot.lane.b32.xlu0 %v1093, 20
        %v1561 = vpop.permute.xlu0 %1560
        %1562 = vrot.lane.b32.xlu0 %v1095, 20
        %v1563 = vpop.permute.xlu0 %1562
        %1564 = vrot.lane.b32.xlu0 %v1098, 20
        %v1565 = vpop.permute.xlu0 %1564
        %1566 = vrot.lane.b32.xlu0 %v1100, 20
        %v1567 = vpop.permute.xlu0 %1566
        %1568 = vrot.lane.b32.xlu0 %v1103, 20
        %v1569 = vpop.permute.xlu0 %1568
        %1570 = vrot.lane.b32.xlu0 %v1105, 20
        %v1571 = vpop.permute.xlu0 %1570
        %1572 = vrot.lane.b32.xlu0 %v1108, 20
        %v1573 = vpop.permute.xlu0 %1572
        %1574 = vrot.lane.b32.xlu0 %v1110, 20
        %v1575 = vpop.permute.xlu0 %1574
        %1576 = vrot.lane.b32.xlu0 %v1113, 20
        %v1577 = vpop.permute.xlu0 %1576
        %1578 = vrot.lane.b32.xlu0 %v1115, 20
        %v1579 = vpop.permute.xlu0 %1578
        %1580 = vrot.lane.b32.xlu0 %v1118, 20
        %v1581 = vpop.permute.xlu0 %1580
        %1582 = vrot.lane.b32.xlu0 %v1120, 20
        %v1583 = vpop.permute.xlu0 %1582
        %1584 = vrot.lane.b32.xlu0 %v1123, 20
        %v1585 = vpop.permute.xlu0 %1584
        %1586 = vrot.lane.b32.xlu0 %v1125, 20
        %v1587 = vpop.permute.xlu0 %1586
        %1588 = vrot.lane.b32.xlu0 %v1128, 20
        %v1589 = vpop.permute.xlu0 %1588
        %1590 = vrot.lane.b32.xlu0 %v1130, 20
        %v1591 = vpop.permute.xlu0 %1590
        %1592 = vrot.lane.b32.xlu0 %v1133, 20
        %v1593 = vpop.permute.xlu0 %1592
        %1594 = vrot.lane.b32.xlu0 %v1135, 20
        %v1595 = vpop.permute.xlu0 %1594
        %1596 = vrot.lane.b32.xlu0 %v1533, 20
        %v1597 = vpop.permute.xlu0 %1596
        %1598 = vrot.lane.b32.xlu0 %v1535, 20
        %v1599 = vpop.permute.xlu0 %1598
        %vm1632 = vcmask 195744
        %1633 = vst.msk [vmem:[#allocation2] sm:$0xff] %vm1632, %v1537
        %1634 = vst.msk [vmem:[#allocation2 + $0x8] sm:$0xff] %vm1632, %v1539
        %1635 = vst.msk [vmem:[#allocation2 + $0x10] sm:$0xff] %vm1632, %v1541
        %1636 = vst.msk [vmem:[#allocation2 + $0x18] sm:$0xff] %vm1632, %v1543
        %1637 = vst.msk [vmem:[#allocation2 + $0x20] sm:$0xff] %vm1632, %v1545
        %1638 = vst.msk [vmem:[#allocation2 + $0x28] sm:$0xff] %vm1632, %v1547
        %1639 = vst.msk [vmem:[#allocation2 + $0x30] sm:$0xff] %vm1632, %v1549
        %1640 = vst.msk [vmem:[#allocation2 + $0x38] sm:$0xff] %vm1632, %v1551
        %1641 = vst.msk [vmem:[#allocation2 + $0x40] sm:$0xff] %vm1632, %v1553
        %1642 = vst.msk [vmem:[#allocation2 + $0x48] sm:$0xff] %vm1632, %v1555
        %1643 = vst.msk [vmem:[#allocation2 + $0x50] sm:$0xff] %vm1632, %v1557
        %1644 = vst.msk [vmem:[#allocation2 + $0x58] sm:$0xff] %vm1632, %v1559
        %1645 = vst.msk [vmem:[#allocation2 + $0x60] sm:$0xff] %vm1632, %v1561
        %1646 = vst.msk [vmem:[#allocation2 + $0x68] sm:$0xff] %vm1632, %v1563
        %1647 = vst.msk [vmem:[#allocation2 + $0x70] sm:$0xff] %vm1632, %v1565
        %1648 = vst.msk [vmem:[#allocation2 + $0x78] sm:$0xff] %vm1632, %v1567
        %1649 = vst.msk [vmem:[#allocation2 + $0x80] sm:$0xff] %vm1632, %v1569
        %1650 = vst.msk [vmem:[#allocation2 + $0x88] sm:$0xff] %vm1632, %v1571
        %1651 = vst.msk [vmem:[#allocation2 + $0x90] sm:$0xff] %vm1632, %v1573
        %1652 = vst.msk [vmem:[#allocation2 + $0x98] sm:$0xff] %vm1632, %v1575
        %1653 = vst.msk [vmem:[#allocation2 + $0xa0] sm:$0xff] %vm1632, %v1577
        %1654 = vst.msk [vmem:[#allocation2 + $0xa8] sm:$0xff] %vm1632, %v1579
        %1655 = vst.msk [vmem:[#allocation2 + $0xb0] sm:$0xff] %vm1632, %v1581
        %1656 = vst.msk [vmem:[#allocation2 + $0xb8] sm:$0xff] %vm1632, %v1583
        %1657 = vst.msk [vmem:[#allocation2 + $0xc0] sm:$0xff] %vm1632, %v1585
        %1658 = vst.msk [vmem:[#allocation2 + $0xc8] sm:$0xff] %vm1632, %v1587
        %1659 = vst.msk [vmem:[#allocation2 + $0xd0] sm:$0xff] %vm1632, %v1589
        %1660 = vst.msk [vmem:[#allocation2 + $0xd8] sm:$0xff] %vm1632, %v1591
        %1661 = vst.msk [vmem:[#allocation2 + $0xe0] sm:$0xff] %vm1632, %v1593
        %1662 = vst.msk [vmem:[#allocation2 + $0xe8] sm:$0xff] %vm1632, %v1595
        %1663 = vst.msk [vmem:[#allocation2 + $0xf0] sm:$0xff] %vm1632, %v1597
        %1664 = vst.msk [vmem:[#allocation2 + $0xf8] sm:$0xff] %vm1632, %v1599
        %1667 = vrot.lane.b32.xlu0 %v716, 24
        %v1668 = vpop.permute.xlu0 %1667
        %1669 = vrot.lane.b32.xlu0 %v717, 24
        %v1670 = vpop.permute.xlu0 %1669
        %1671 = vrot.lane.b32.xlu0 %v719, 24
        %v1672 = vpop.permute.xlu0 %1671
        %1673 = vrot.lane.b32.xlu0 %v720, 24
        %v1674 = vpop.permute.xlu0 %1673
        %1675 = vrot.lane.b32.xlu0 %v722, 24
        %v1676 = vpop.permute.xlu0 %1675
        %1677 = vrot.lane.b32.xlu0 %v723, 24
        %v1678 = vpop.permute.xlu0 %1677
        %1679 = vrot.lane.b32.xlu0 %v725, 24
        %v1680 = vpop.permute.xlu0 %1679
        %1681 = vrot.lane.b32.xlu0 %v726, 24
        %v1682 = vpop.permute.xlu0 %1681
        %1683 = vrot.lane.b32.xlu0 %v728, 24
        %v1684 = vpop.permute.xlu0 %1683
        %1685 = vrot.lane.b32.xlu0 %v729, 24
        %v1686 = vpop.permute.xlu0 %1685
        %1687 = vrot.lane.b32.xlu0 %v731, 24
        %v1688 = vpop.permute.xlu0 %1687
        %1689 = vrot.lane.b32.xlu0 %v732, 24
        %v1690 = vpop.permute.xlu0 %1689
        %1691 = vrot.lane.b32.xlu0 %v734, 24
        %v1692 = vpop.permute.xlu0 %1691
        %1693 = vrot.lane.b32.xlu0 %v735, 24
        %v1694 = vpop.permute.xlu0 %1693
        %1695 = vrot.lane.b32.xlu0 %v737, 24
        %v1696 = vpop.permute.xlu0 %1695
        %1697 = vrot.lane.b32.xlu0 %v738, 24
        %v1698 = vpop.permute.xlu0 %1697
        %1699 = vrot.lane.b32.xlu0 %v740, 24
        %v1700 = vpop.permute.xlu0 %1699
        %1701 = vrot.lane.b32.xlu0 %v741, 24
        %v1702 = vpop.permute.xlu0 %1701
        %1703 = vrot.lane.b32.xlu0 %v743, 24
        %v1704 = vpop.permute.xlu0 %1703
        %1705 = vrot.lane.b32.xlu0 %v744, 24
        %v1706 = vpop.permute.xlu0 %1705
        %1707 = vrot.lane.b32.xlu0 %v746, 24
        %v1708 = vpop.permute.xlu0 %1707
        %1709 = vrot.lane.b32.xlu0 %v747, 24
        %v1710 = vpop.permute.xlu0 %1709
        %1711 = vrot.lane.b32.xlu0 %v749, 24
        %v1712 = vpop.permute.xlu0 %1711
        %1713 = vrot.lane.b32.xlu0 %v750, 24
        %v1714 = vpop.permute.xlu0 %1713
        %1715 = vrot.lane.b32.xlu0 %v752, 24
        %v1716 = vpop.permute.xlu0 %1715
        %1717 = vrot.lane.b32.xlu0 %v753, 24
        %v1718 = vpop.permute.xlu0 %1717
        %1719 = vrot.lane.b32.xlu0 %v755, 24
        %v1720 = vpop.permute.xlu0 %1719
        %1721 = vrot.lane.b32.xlu0 %v756, 24
        %v1722 = vpop.permute.xlu0 %1721
        %1723 = vrot.lane.b32.xlu0 %v758, 24
        %v1724 = vpop.permute.xlu0 %1723
        %1725 = vrot.lane.b32.xlu0 %v759, 24
        %v1726 = vpop.permute.xlu0 %1725
        %1727 = vrot.lane.b32.xlu0 %v761, 24
        %v1728 = vpop.permute.xlu0 %1727
        %1729 = vrot.lane.b32.xlu0 %v762, 24
        %v1730 = vpop.permute.xlu0 %1729
        %vm1763 = vcmask 228544
        %1764 = vst.msk [vmem:[#allocation2] sm:$0xff] %vm1763, %v1668
        %1765 = vst.msk [vmem:[#allocation2 + $0x8] sm:$0xff] %vm1763, %v1670
        %1766 = vst.msk [vmem:[#allocation2 + $0x10] sm:$0xff] %vm1763, %v1672
        %1767 = vst.msk [vmem:[#allocation2 + $0x18] sm:$0xff] %vm1763, %v1674
        %1768 = vst.msk [vmem:[#allocation2 + $0x20] sm:$0xff] %vm1763, %v1676
        %1769 = vst.msk [vmem:[#allocation2 + $0x28] sm:$0xff] %vm1763, %v1678
        %1770 = vst.msk [vmem:[#allocation2 + $0x30] sm:$0xff] %vm1763, %v1680
        %1771 = vst.msk [vmem:[#allocation2 + $0x38] sm:$0xff] %vm1763, %v1682
        %1772 = vst.msk [vmem:[#allocation2 + $0x40] sm:$0xff] %vm1763, %v1684
        %1773 = vst.msk [vmem:[#allocation2 + $0x48] sm:$0xff] %vm1763, %v1686
        %1774 = vst.msk [vmem:[#allocation2 + $0x50] sm:$0xff] %vm1763, %v1688
        %1775 = vst.msk [vmem:[#allocation2 + $0x58] sm:$0xff] %vm1763, %v1690
        %1776 = vst.msk [vmem:[#allocation2 + $0x60] sm:$0xff] %vm1763, %v1692
        %1777 = vst.msk [vmem:[#allocation2 + $0x68] sm:$0xff] %vm1763, %v1694
        %1778 = vst.msk [vmem:[#allocation2 + $0x70] sm:$0xff] %vm1763, %v1696
        %1779 = vst.msk [vmem:[#allocation2 + $0x78] sm:$0xff] %vm1763, %v1698
        %1780 = vst.msk [vmem:[#allocation2 + $0x80] sm:$0xff] %vm1763, %v1700
        %1781 = vst.msk [vmem:[#allocation2 + $0x88] sm:$0xff] %vm1763, %v1702
        %1782 = vst.msk [vmem:[#allocation2 + $0x90] sm:$0xff] %vm1763, %v1704
        %1783 = vst.msk [vmem:[#allocation2 + $0x98] sm:$0xff] %vm1763, %v1706
        %1784 = vst.msk [vmem:[#allocation2 + $0xa0] sm:$0xff] %vm1763, %v1708
        %1785 = vst.msk [vmem:[#allocation2 + $0xa8] sm:$0xff] %vm1763, %v1710
        %1786 = vst.msk [vmem:[#allocation2 + $0xb0] sm:$0xff] %vm1763, %v1712
        %1787 = vst.msk [vmem:[#allocation2 + $0xb8] sm:$0xff] %vm1763, %v1714
        %1788 = vst.msk [vmem:[#allocation2 + $0xc0] sm:$0xff] %vm1763, %v1716
        %1789 = vst.msk [vmem:[#allocation2 + $0xc8] sm:$0xff] %vm1763, %v1718
        %1790 = vst.msk [vmem:[#allocation2 + $0xd0] sm:$0xff] %vm1763, %v1720
        %1791 = vst.msk [vmem:[#allocation2 + $0xd8] sm:$0xff] %vm1763, %v1722
        %1792 = vst.msk [vmem:[#allocation2 + $0xe0] sm:$0xff] %vm1763, %v1724
        %1793 = vst.msk [vmem:[#allocation2 + $0xe8] sm:$0xff] %vm1763, %v1726
        %1794 = vst.msk [vmem:[#allocation2 + $0xf0] sm:$0xff] %vm1763, %v1728
        %1795 = vst.msk [vmem:[#allocation2 + $0xf8] sm:$0xff] %vm1763, %v1730
        %v1797 = vrot.slane %v761, 1
        %v1798 = vrot.slane %v762, 1
        %v1799 = vsel %vm845, %v1797, %v1798
        %v1800 = vrot.slane %v763, 1
        %v1801 = vsel %vm845, %v1798, %v1800
        %1802 = vrot.lane.b32.xlu0 %v858, 28
        %v1803 = vpop.permute.xlu0 %1802
        %1804 = vrot.lane.b32.xlu0 %v860, 28
        %v1805 = vpop.permute.xlu0 %1804
        %1806 = vrot.lane.b32.xlu0 %v863, 28
        %v1807 = vpop.permute.xlu0 %1806
        %1808 = vrot.lane.b32.xlu0 %v865, 28
        %v1809 = vpop.permute.xlu0 %1808
        %1810 = vrot.lane.b32.xlu0 %v868, 28
        %v1811 = vpop.permute.xlu0 %1810
        %1812 = vrot.lane.b32.xlu0 %v870, 28
        %v1813 = vpop.permute.xlu0 %1812
        %1814 = vrot.lane.b32.xlu0 %v873, 28
        %v1815 = vpop.permute.xlu0 %1814
        %1816 = vrot.lane.b32.xlu0 %v875, 28
        %v1817 = vpop.permute.xlu0 %1816
        %1818 = vrot.lane.b32.xlu0 %v878, 28
        %v1819 = vpop.permute.xlu0 %1818
        %1820 = vrot.lane.b32.xlu0 %v880, 28
        %v1821 = vpop.permute.xlu0 %1820
        %1822 = vrot.lane.b32.xlu0 %v883, 28
        %v1823 = vpop.permute.xlu0 %1822
        %1824 = vrot.lane.b32.xlu0 %v885, 28
        %v1825 = vpop.permute.xlu0 %1824
        %1826 = vrot.lane.b32.xlu0 %v888, 28
        %v1827 = vpop.permute.xlu0 %1826
        %1828 = vrot.lane.b32.xlu0 %v890, 28
        %v1829 = vpop.permute.xlu0 %1828
        %1830 = vrot.lane.b32.xlu0 %v893, 28
        %v1831 = vpop.permute.xlu0 %1830
        %1832 = vrot.lane.b32.xlu0 %v895, 28
        %v1833 = vpop.permute.xlu0 %1832
        %1834 = vrot.lane.b32.xlu0 %v898, 28
        %v1835 = vpop.permute.xlu0 %1834
        %1836 = vrot.lane.b32.xlu0 %v900, 28
        %v1837 = vpop.permute.xlu0 %1836
        %1838 = vrot.lane.b32.xlu0 %v903, 28
        %v1839 = vpop.permute.xlu0 %1838
        %1840 = vrot.lane.b32.xlu0 %v905, 28
        %v1841 = vpop.permute.xlu0 %1840
        %1842 = vrot.lane.b32.xlu0 %v908, 28
        %v1843 = vpop.permute.xlu0 %1842
        %1844 = vrot.lane.b32.xlu0 %v910, 28
        %v1845 = vpop.permute.xlu0 %1844
        %1846 = vrot.lane.b32.xlu0 %v913, 28
        %v1847 = vpop.permute.xlu0 %1846
        %1848 = vrot.lane.b32.xlu0 %v915, 28
        %v1849 = vpop.permute.xlu0 %1848
        %1850 = vrot.lane.b32.xlu0 %v918, 28
        %v1851 = vpop.permute.xlu0 %1850
        %1852 = vrot.lane.b32.xlu0 %v920, 28
        %v1853 = vpop.permute.xlu0 %1852
        %1854 = vrot.lane.b32.xlu0 %v923, 28
        %v1855 = vpop.permute.xlu0 %1854
        %1856 = vrot.lane.b32.xlu0 %v925, 28
        %v1857 = vpop.permute.xlu0 %1856
        %1858 = vrot.lane.b32.xlu0 %v1399, 28
        %v1859 = vpop.permute.xlu0 %1858
        %1860 = vrot.lane.b32.xlu0 %v1401, 28
        %v1861 = vpop.permute.xlu0 %1860
        %1862 = vrot.lane.b32.xlu0 %v1799, 28
        %v1863 = vpop.permute.xlu0 %1862
        %1864 = vrot.lane.b32.xlu0 %v1801, 28
        %v1865 = vpop.permute.xlu0 %1864
        %vm1898 = vcmask 261344
        %1899 = vst.msk [vmem:[#allocation2] sm:$0xff] %vm1898, %v1803
        %1900 = vst.msk [vmem:[#allocation2 + $0x8] sm:$0xff] %vm1898, %v1805
        %1901 = vst.msk [vmem:[#allocation2 + $0x10] sm:$0xff] %vm1898, %v1807
        %1902 = vst.msk [vmem:[#allocation2 + $0x18] sm:$0xff] %vm1898, %v1809
        %1903 = vst.msk [vmem:[#allocation2 + $0x20] sm:$0xff] %vm1898, %v1811
        %1904 = vst.msk [vmem:[#allocation2 + $0x28] sm:$0xff] %vm1898, %v1813
        %1905 = vst.msk [vmem:[#allocation2 + $0x30] sm:$0xff] %vm1898, %v1815
        %1906 = vst.msk [vmem:[#allocation2 + $0x38] sm:$0xff] %vm1898, %v1817
        %1907 = vst.msk [vmem:[#allocation2 + $0x40] sm:$0xff] %vm1898, %v1819
        %1908 = vst.msk [vmem:[#allocation2 + $0x48] sm:$0xff] %vm1898, %v1821
        %1909 = vst.msk [vmem:[#allocation2 + $0x50] sm:$0xff] %vm1898, %v1823
        %1910 = vst.msk [vmem:[#allocation2 + $0x58] sm:$0xff] %vm1898, %v1825
        %1911 = vst.msk [vmem:[#allocation2 + $0x60] sm:$0xff] %vm1898, %v1827
        %1912 = vst.msk [vmem:[#allocation2 + $0x68] sm:$0xff] %vm1898, %v1829
        %1913 = vst.msk [vmem:[#allocation2 + $0x70] sm:$0xff] %vm1898, %v1831
        %1914 = vst.msk [vmem:[#allocation2 + $0x78] sm:$0xff] %vm1898, %v1833
        %1915 = vst.msk [vmem:[#allocation2 + $0x80] sm:$0xff] %vm1898, %v1835
        %1916 = vst.msk [vmem:[#allocation2 + $0x88] sm:$0xff] %vm1898, %v1837
        %1917 = vst.msk [vmem:[#allocation2 + $0x90] sm:$0xff] %vm1898, %v1839
        %1918 = vst.msk [vmem:[#allocation2 + $0x98] sm:$0xff] %vm1898, %v1841
        %1919 = vst.msk [vmem:[#allocation2 + $0xa0] sm:$0xff] %vm1898, %v1843
        %1920 = vst.msk [vmem:[#allocation2 + $0xa8] sm:$0xff] %vm1898, %v1845
        %1921 = vst.msk [vmem:[#allocation2 + $0xb0] sm:$0xff] %vm1898, %v1847
        %1922 = vst.msk [vmem:[#allocation2 + $0xb8] sm:$0xff] %vm1898, %v1849
        %1923 = vst.msk [vmem:[#allocation2 + $0xc0] sm:$0xff] %vm1898, %v1851
        %1924 = vst.msk [vmem:[#allocation2 + $0xc8] sm:$0xff] %vm1898, %v1853
        %1925 = vst.msk [vmem:[#allocation2 + $0xd0] sm:$0xff] %vm1898, %v1855
        %1926 = vst.msk [vmem:[#allocation2 + $0xd8] sm:$0xff] %vm1898, %v1857
        %1927 = vst.msk [vmem:[#allocation2 + $0xe0] sm:$0xff] %vm1898, %v1859
        %1928 = vst.msk [vmem:[#allocation2 + $0xe8] sm:$0xff] %vm1898, %v1861
        %1929 = vst.msk [vmem:[#allocation2 + $0xf0] sm:$0xff] %vm1898, %v1863
        %1930 = vst.msk [vmem:[#allocation2 + $0xf8] sm:$0xff] %vm1898, %v1865
        %v1931 = vrot.slane %v761, 2
        %v1932 = vrot.slane %v762, 2
        %v1933 = vsel %vm1055, %v1931, %v1932
        %v1934 = vrot.slane %v763, 2
        %v1935 = vsel %vm1055, %v1932, %v1934
        %1936 = vrot.lane.b32.xlu0 %v1068, 32
        %v1937 = vpop.permute.xlu0 %1936
        %1938 = vrot.lane.b32.xlu0 %v1070, 32
        %v1939 = vpop.permute.xlu0 %1938
        %1940 = vrot.lane.b32.xlu0 %v1073, 32
        %v1941 = vpop.permute.xlu0 %1940
        %1942 = vrot.lane.b32.xlu0 %v1075, 32
        %v1943 = vpop.permute.xlu0 %1942
        %1944 = vrot.lane.b32.xlu0 %v1078, 32
        %v1945 = vpop.permute.xlu0 %1944
        %1946 = vrot.lane.b32.xlu0 %v1080, 32
        %v1947 = vpop.permute.xlu0 %1946
        %1948 = vrot.lane.b32.xlu0 %v1083, 32
        %v1949 = vpop.permute.xlu0 %1948
        %1950 = vrot.lane.b32.xlu0 %v1085, 32
        %v1951 = vpop.permute.xlu0 %1950
        %1952 = vrot.lane.b32.xlu0 %v1088, 32
        %v1953 = vpop.permute.xlu0 %1952
        %1954 = vrot.lane.b32.xlu0 %v1090, 32
        %v1955 = vpop.permute.xlu0 %1954
        %1956 = vrot.lane.b32.xlu0 %v1093, 32
        %v1957 = vpop.permute.xlu0 %1956
        %1958 = vrot.lane.b32.xlu0 %v1095, 32
        %v1959 = vpop.permute.xlu0 %1958
        %1960 = vrot.lane.b32.xlu0 %v1098, 32
        %v1961 = vpop.permute.xlu0 %1960
        %1962 = vrot.lane.b32.xlu0 %v1100, 32
        %v1963 = vpop.permute.xlu0 %1962
        %1964 = vrot.lane.b32.xlu0 %v1103, 32
        %v1965 = vpop.permute.xlu0 %1964
        %1966 = vrot.lane.b32.xlu0 %v1105, 32
        %v1967 = vpop.permute.xlu0 %1966
        %1968 = vrot.lane.b32.xlu0 %v1108, 32
        %v1969 = vpop.permute.xlu0 %1968
        %1970 = vrot.lane.b32.xlu0 %v1110, 32
        %v1971 = vpop.permute.xlu0 %1970
        %1972 = vrot.lane.b32.xlu0 %v1113, 32
        %v1973 = vpop.permute.xlu0 %1972
        %1974 = vrot.lane.b32.xlu0 %v1115, 32
        %v1975 = vpop.permute.xlu0 %1974
        %1976 = vrot.lane.b32.xlu0 %v1118, 32
        %v1977 = vpop.permute.xlu0 %1976
        %1978 = vrot.lane.b32.xlu0 %v1120, 32
        %v1979 = vpop.permute.xlu0 %1978
        %1980 = vrot.lane.b32.xlu0 %v1123, 32
        %v1981 = vpop.permute.xlu0 %1980
        %1982 = vrot.lane.b32.xlu0 %v1125, 32
        %v1983 = vpop.permute.xlu0 %1982
        %1984 = vrot.lane.b32.xlu0 %v1128, 32
        %v1985 = vpop.permute.xlu0 %1984
        %1986 = vrot.lane.b32.xlu0 %v1130, 32
        %v1987 = vpop.permute.xlu0 %1986
        %1988 = vrot.lane.b32.xlu0 %v1133, 32
        %v1989 = vpop.permute.xlu0 %1988
        %1990 = vrot.lane.b32.xlu0 %v1135, 32
        %v1991 = vpop.permute.xlu0 %1990
        %1992 = vrot.lane.b32.xlu0 %v1533, 32
        %v1993 = vpop.permute.xlu0 %1992
        %1994 = vrot.lane.b32.xlu0 %v1535, 32
        %v1995 = vpop.permute.xlu0 %1994
        %1996 = vrot.lane.b32.xlu0 %v1933, 32
        %v1997 = vpop.permute.xlu0 %1996
        %1998 = vrot.lane.b32.xlu0 %v1935, 32
        %v1999 = vpop.permute.xlu0 %1998
        %vm2032 = vcmask 294144
        %2033 = vst.msk [vmem:[#allocation2] sm:$0xff] %vm2032, %v1937
        %2034 = vst.msk [vmem:[#allocation2 + $0x8] sm:$0xff] %vm2032, %v1939
        %2035 = vst.msk [vmem:[#allocation2 + $0x10] sm:$0xff] %vm2032, %v1941
        %2036 = vst.msk [vmem:[#allocation2 + $0x18] sm:$0xff] %vm2032, %v1943
        %2037 = vst.msk [vmem:[#allocation2 + $0x20] sm:$0xff] %vm2032, %v1945
        %2038 = vst.msk [vmem:[#allocation2 + $0x28] sm:$0xff] %vm2032, %v1947
        %2039 = vst.msk [vmem:[#allocation2 + $0x30] sm:$0xff] %vm2032, %v1949
        %2040 = vst.msk [vmem:[#allocation2 + $0x38] sm:$0xff] %vm2032, %v1951
        %2041 = vst.msk [vmem:[#allocation2 + $0x40] sm:$0xff] %vm2032, %v1953
        %2042 = vst.msk [vmem:[#allocation2 + $0x48] sm:$0xff] %vm2032, %v1955
        %2043 = vst.msk [vmem:[#allocation2 + $0x50] sm:$0xff] %vm2032, %v1957
        %2044 = vst.msk [vmem:[#allocation2 + $0x58] sm:$0xff] %vm2032, %v1959
        %2045 = vst.msk [vmem:[#allocation2 + $0x60] sm:$0xff] %vm2032, %v1961
        %2046 = vst.msk [vmem:[#allocation2 + $0x68] sm:$0xff] %vm2032, %v1963
        %2047 = vst.msk [vmem:[#allocation2 + $0x70] sm:$0xff] %vm2032, %v1965
        %2048 = vst.msk [vmem:[#allocation2 + $0x78] sm:$0xff] %vm2032, %v1967
        %2049 = vst.msk [vmem:[#allocation2 + $0x80] sm:$0xff] %vm2032, %v1969
        %2050 = vst.msk [vmem:[#allocation2 + $0x88] sm:$0xff] %vm2032, %v1971
        %2051 = vst.msk [vmem:[#allocation2 + $0x90] sm:$0xff] %vm2032, %v1973
        %2052 = vst.msk [vmem:[#allocation2 + $0x98] sm:$0xff] %vm2032, %v1975
        %2053 = vst.msk [vmem:[#allocation2 + $0xa0] sm:$0xff] %vm2032, %v1977
        %2054 = vst.msk [vmem:[#allocation2 + $0xa8] sm:$0xff] %vm2032, %v1979
        %2055 = vst.msk [vmem:[#allocation2 + $0xb0] sm:$0xff] %vm2032, %v1981
        %2056 = vst.msk [vmem:[#allocation2 + $0xb8] sm:$0xff] %vm2032, %v1983
        %2057 = vst.msk [vmem:[#allocation2 + $0xc0] sm:$0xff] %vm2032, %v1985
        %2058 = vst.msk [vmem:[#allocation2 + $0xc8] sm:$0xff] %vm2032, %v1987
        %2059 = vst.msk [vmem:[#allocation2 + $0xd0] sm:$0xff] %vm2032, %v1989
        %2060 = vst.msk [vmem:[#allocation2 + $0xd8] sm:$0xff] %vm2032, %v1991
        %2061 = vst.msk [vmem:[#allocation2 + $0xe0] sm:$0xff] %vm2032, %v1993
        %2062 = vst.msk [vmem:[#allocation2 + $0xe8] sm:$0xff] %vm2032, %v1995
        %2063 = vst.msk [vmem:[#allocation2 + $0xf0] sm:$0xff] %vm2032, %v1997
        %2064 = vst.msk [vmem:[#allocation2 + $0xf8] sm:$0xff] %vm2032, %v1999
        %v2065 = vld [vmem:[#allocation2] sm:$0xff]
        %v2066 = vld [vmem:[#allocation2 + $0x8] sm:$0xff]
        %v2067 = vld [vmem:[#allocation2 + $0x10] sm:$0xff]
        %v2068 = vld [vmem:[#allocation2 + $0x18] sm:$0xff]
        %v2069 = vld [vmem:[#allocation2 + $0x20] sm:$0xff]
        %v2070 = vld [vmem:[#allocation2 + $0x28] sm:$0xff]
        %v2071 = vld [vmem:[#allocation2 + $0x30] sm:$0xff]
        %v2072 = vld [vmem:[#allocation2 + $0x38] sm:$0xff]
        %v2073 = vld [vmem:[#allocation2 + $0x40] sm:$0xff]
        %v2074 = vld [vmem:[#allocation2 + $0x48] sm:$0xff]
        %v2075 = vld [vmem:[#allocation2 + $0x50] sm:$0xff]
        %v2076 = vld [vmem:[#allocation2 + $0x58] sm:$0xff]
        %v2077 = vld [vmem:[#allocation2 + $0x60] sm:$0xff]
        %v2078 = vld [vmem:[#allocation2 + $0x68] sm:$0xff]
        %v2079 = vld [vmem:[#allocation2 + $0x70] sm:$0xff]
        %v2080 = vld [vmem:[#allocation2 + $0x78] sm:$0xff]
        %v2081 = vld [vmem:[#allocation2 + $0x80] sm:$0xff]
        %v2082 = vld [vmem:[#allocation2 + $0x88] sm:$0xff]
        %v2083 = vld [vmem:[#allocation2 + $0x90] sm:$0xff]
        %v2084 = vld [vmem:[#allocation2 + $0x98] sm:$0xff]
        %v2085 = vld [vmem:[#allocation2 + $0xa0] sm:$0xff]
        %v2086 = vld [vmem:[#allocation2 + $0xa8] sm:$0xff]
        %v2087 = vld [vmem:[#allocation2 + $0xb0] sm:$0xff]
        %v2088 = vld [vmem:[#allocation2 + $0xb8] sm:$0xff]
        %v2089 = vld [vmem:[#allocation2 + $0xc0] sm:$0xff]
        %v2090 = vld [vmem:[#allocation2 + $0xc8] sm:$0xff]
        %v2091 = vld [vmem:[#allocation2 + $0xd0] sm:$0xff]
        %v2092 = vld [vmem:[#allocation2 + $0xd8] sm:$0xff]
        %v2093 = vld [vmem:[#allocation2 + $0xe0] sm:$0xff]
        %v2094 = vld [vmem:[#allocation2 + $0xe8] sm:$0xff]
        %v2095 = vld [vmem:[#allocation2 + $0xf0] sm:$0xff]
        %v2096 = vld [vmem:[#allocation2 + $0xf8] sm:$0xff]
        %v2097 = vpack.c.bf16 %v2066, %v2065
        %v2098 = vpack.c.bf16 %v2068, %v2067
        %v2099 = vpack.c.bf16 %v2070, %v2069
        %v2100 = vpack.c.bf16 %v2072, %v2071
        %v2101 = vpack.c.bf16 %v2074, %v2073
        %v2102 = vpack.c.bf16 %v2076, %v2075
        %v2103 = vpack.c.bf16 %v2078, %v2077
        %v2104 = vpack.c.bf16 %v2080, %v2079
        %v2105 = vpack.c.bf16 %v2082, %v2081
        %v2106 = vpack.c.bf16 %v2084, %v2083
        %v2107 = vpack.c.bf16 %v2086, %v2085
        %v2108 = vpack.c.bf16 %v2088, %v2087
        %v2109 = vpack.c.bf16 %v2090, %v2089
        %v2110 = vpack.c.bf16 %v2092, %v2091
        %v2111 = vpack.c.bf16 %v2094, %v2093
        %v2112 = vpack.c.bf16 %v2096, %v2095
        %v2113 = vld [vmem:[%s1] sm:$0xf]
        %v2114 = vld [vmem:[%s1 + $0x4] sm:$0xf]
        %v2115 = vld [vmem:[%s1 + $0x8] sm:$0xf]
        %v2116 = vld [vmem:[%s1 + $0xc] sm:$0xf]
        %v2117 = vld [vmem:[%s1 + $0x10] sm:$0x3]
        %v2118 = vld [vmem:[%s2] sm:$0x1]
        %v2120 = vlaneseq
        %v2121 = vshrl.u32 %v2120, 7
        %v2122 = vsub.s32 0, %v2121
        %v2123 = vrot.slane %v2118, %v2122
        %v2130 = vunpack.c.l.b16 %v2113
        %v2131 = vunpack.c.l.b16 %v2114
        %v2132 = vunpack.c.l.b16 %v2115
        %v2133 = vunpack.c.l.b16 %v2116
        %v2134 = vunpack.c.l.b16 %v2117
        %v2135 = vpack.c.b16 %v2131, %v2130
        %v2136 = vpack.c.b16 %v2133, %v2132
        %v2137 = vpack.c.b16 %v2134, %v2134
        %vm2140 = vcmask 293888
        %v2142 = vsel %vm2140, %v2097, 0
        %v2145 = vsel %vm2140, %v2098, 0
        %v2148 = vsel %vm2140, %v2099, 0
        %v2151 = vsel %vm2140, %v2100, 0
        %v2154 = vsel %vm2140, %v2101, 0
        %v2157 = vsel %vm2140, %v2102, 0
        %v2160 = vsel %vm2140, %v2103, 0
        %v2163 = vsel %vm2140, %v2104, 0
        %v2166 = vsel %vm2140, %v2105, 0
        %v2169 = vsel %vm2140, %v2106, 0
        %v2172 = vsel %vm2140, %v2107, 0
        %v2175 = vsel %vm2140, %v2108, 0
        %v2178 = vsel %vm2140, %v2109, 0
        %v2181 = vsel %vm2140, %v2110, 0
        %v2184 = vsel %vm2140, %v2111, 0
        %v2187 = vsel %vm2140, %v2112, 0
        %vm2189 = vcmask 1041408
        %v2191 = vsel %vm2189, %v2137, 0
        %2193 = vmatprep.subr.bf16.mxu0 0
        %2194 = vmatpush1.bf16.msra.mxu0 %v2135
        %2195 = vmatprep.subr.bf16.mxu0 0
        %2196 = vmatpush1.bf16.msra.mxu0 %v2136
        %2197 = vmatprep.subr.bf16.mxu0 0
        %2198 = vmatpush1.bf16.msra.mxu0 %v2191
        %2199 = vmatprep.subr.bf16.mxu0 0
        %2200 = vmatpush1.bf16.msra.mxu0 0
        %2201 = vmatprep.subr.bf16.mxu0 0
        %2202 = vmatpush1.bf16.msra.mxu0 0
        %2203 = vmatprep.subr.bf16.mxu0 0
        %2204 = vmatpush1.bf16.msra.mxu0 0
        %2205 = vmatprep.subr.bf16.mxu0 0
        %2206 = vmatpush1.bf16.msra.mxu0 0
        %2207 = vmatprep.subr.bf16.mxu0 0
        %2208 = vmatpush1.bf16.msra.mxu0 0
        %2209 = vmatprep.subr.bf16.mxu0 0
        %2210 = vmatpush1.bf16.msra.mxu0 0
        %2211 = vmatprep.subr.bf16.mxu0 0
        %2212 = vmatpush1.bf16.msra.mxu0 0
        %2213 = vmatprep.subr.bf16.mxu0 0
        %2214 = vmatpush1.bf16.msra.mxu0 0
        %2215 = vmatprep.subr.bf16.mxu0 0
        %2216 = vmatpush1.bf16.msra.mxu0 0
        %2217 = vmatprep.subr.bf16.mxu0 0
        %2218 = vmatpush1.bf16.msra.mxu0 0
        %2219 = vmatprep.subr.bf16.mxu0 0
        %2220 = vmatpush1.bf16.msra.mxu0 0
        %2221 = vmatprep.subr.bf16.mxu0 0
        %2222 = vmatpush1.bf16.msra.mxu0 0
        %2223 = vmatprep.subr.bf16.mxu0 0
        %2224 = vmatpush1.bf16.msra.mxu0 0
        %2225 = vmatprep.mubr.bf16.mxu0 0
        %2226 = vmatmul.mubr.bf16.gmra.mrb[0].mxu0 %v2142
        %v2227 = vpop.f32.mrb[0].mxu0
        %v2228 = vadd.f32 %v2123, %v2227
        %v2229 = vpop.f32.mrb[0].mxu0
        %v2230 = vpop.f32.mrb[0].mxu0
        %v2231 = vadd.f32 %v2123, %v2230
        %v2232 = vpop.f32.mrb[0].mxu0
        %2233 = vmatprep.mubr.bf16.mxu0 0
        %2234 = vmatmul.mubr.bf16.gmra.mrb[0].mxu0 %v2145
        %v2235 = vpop.f32.mrb[0].mxu0
        %v2236 = vadd.f32 %v2123, %v2235
        %v2237 = vpop.f32.mrb[0].mxu0
        %v2238 = vpop.f32.mrb[0].mxu0
        %v2239 = vadd.f32 %v2123, %v2238
        %v2240 = vpop.f32.mrb[0].mxu0
        %2241 = vmatprep.mubr.bf16.mxu0 0
        %2242 = vmatmul.mubr.bf16.gmra.mrb[0].mxu0 %v2148
        %v2243 = vpop.f32.mrb[0].mxu0
        %v2244 = vadd.f32 %v2123, %v2243
        %v2245 = vpop.f32.mrb[0].mxu0
        %v2246 = vpop.f32.mrb[0].mxu0
        %v2247 = vadd.f32 %v2123, %v2246
        %v2248 = vpop.f32.mrb[0].mxu0
        %2249 = vmatprep.mubr.bf16.mxu0 0
        %2250 = vmatmul.mubr.bf16.gmra.mrb[0].mxu0 %v2151
        %v2251 = vpop.f32.mrb[0].mxu0
        %v2252 = vadd.f32 %v2123, %v2251
        %v2253 = vpop.f32.mrb[0].mxu0
        %v2254 = vpop.f32.mrb[0].mxu0
        %v2255 = vadd.f32 %v2123, %v2254
        %v2256 = vpop.f32.mrb[0].mxu0
        %2257 = vmatprep.mubr.bf16.mxu0 0
        %2258 = vmatmul.mubr.bf16.gmra.mrb[0].mxu0 %v2154
        %v2259 = vpop.f32.mrb[0].mxu0
        %v2260 = vadd.f32 %v2123, %v2259
        %v2261 = vpop.f32.mrb[0].mxu0
        %v2262 = vpop.f32.mrb[0].mxu0
        %v2263 = vadd.f32 %v2123, %v2262
        %v2264 = vpop.f32.mrb[0].mxu0
        %2265 = vmatprep.mubr.bf16.mxu0 0
        %2266 = vmatmul.mubr.bf16.gmra.mrb[0].mxu0 %v2157
        %v2267 = vpop.f32.mrb[0].mxu0
        %v2268 = vadd.f32 %v2123, %v2267
        %v2269 = vpop.f32.mrb[0].mxu0
        %v2270 = vpop.f32.mrb[0].mxu0
        %v2271 = vadd.f32 %v2123, %v2270
        %v2272 = vpop.f32.mrb[0].mxu0
        %2273 = vmatprep.mubr.bf16.mxu0 0
        %2274 = vmatmul.mubr.bf16.gmra.mrb[0].mxu0 %v2160
        %v2275 = vpop.f32.mrb[0].mxu0
        %v2276 = vadd.f32 %v2123, %v2275
        %v2277 = vpop.f32.mrb[0].mxu0
        %v2278 = vpop.f32.mrb[0].mxu0
        %v2279 = vadd.f32 %v2123, %v2278
        %v2280 = vpop.f32.mrb[0].mxu0
        %2281 = vmatprep.mubr.bf16.mxu0 0
        %2282 = vmatmul.mubr.bf16.gmra.mrb[0].mxu0 %v2163
        %v2283 = vpop.f32.mrb[0].mxu0
        %v2284 = vadd.f32 %v2123, %v2283
        %v2285 = vpop.f32.mrb[0].mxu0
        %v2286 = vpop.f32.mrb[0].mxu0
        %v2287 = vadd.f32 %v2123, %v2286
        %v2288 = vpop.f32.mrb[0].mxu0
        %2289 = vmatprep.mubr.bf16.mxu0 0
        %2290 = vmatmul.mubr.bf16.gmra.mrb[0].mxu0 %v2166
        %v2291 = vpop.f32.mrb[0].mxu0
        %v2292 = vadd.f32 %v2123, %v2291
        %v2293 = vpop.f32.mrb[0].mxu0
        %v2294 = vpop.f32.mrb[0].mxu0
        %v2295 = vadd.f32 %v2123, %v2294
        %v2296 = vpop.f32.mrb[0].mxu0
        %2297 = vmatprep.mubr.bf16.mxu0 0
        %2298 = vmatmul.mubr.bf16.gmra.mrb[0].mxu0 %v2169
        %v2299 = vpop.f32.mrb[0].mxu0
        %v2300 = vadd.f32 %v2123, %v2299
        %v2301 = vpop.f32.mrb[0].mxu0
        %v2302 = vpop.f32.mrb[0].mxu0
        %v2303 = vadd.f32 %v2123, %v2302
        %v2304 = vpop.f32.mrb[0].mxu0
        %2305 = vmatprep.mubr.bf16.mxu0 0
        %2306 = vmatmul.mubr.bf16.gmra.mrb[0].mxu0 %v2172
        %v2307 = vpop.f32.mrb[0].mxu0
        %v2308 = vadd.f32 %v2123, %v2307
        %v2309 = vpop.f32.mrb[0].mxu0
        %v2310 = vpop.f32.mrb[0].mxu0
        %v2311 = vadd.f32 %v2123, %v2310
        %v2312 = vpop.f32.mrb[0].mxu0
        %2313 = vmatprep.mubr.bf16.mxu0 0
        %2314 = vmatmul.mubr.bf16.gmra.mrb[0].mxu0 %v2175
        %v2315 = vpop.f32.mrb[0].mxu0
        %v2316 = vadd.f32 %v2123, %v2315
        %v2317 = vpop.f32.mrb[0].mxu0
        %v2318 = vpop.f32.mrb[0].mxu0
        %v2319 = vadd.f32 %v2123, %v2318
        %v2320 = vpop.f32.mrb[0].mxu0
        %2321 = vmatprep.mubr.bf16.mxu0 0
        %2322 = vmatmul.mubr.bf16.gmra.mrb[0].mxu0 %v2178
        %v2323 = vpop.f32.mrb[0].mxu0
        %v2324 = vadd.f32 %v2123, %v2323
        %v2325 = vpop.f32.mrb[0].mxu0
        %v2326 = vpop.f32.mrb[0].mxu0
        %v2327 = vadd.f32 %v2123, %v2326
        %v2328 = vpop.f32.mrb[0].mxu0
        %2329 = vmatprep.mubr.bf16.mxu0 0
        %2330 = vmatmul.mubr.bf16.gmra.mrb[0].mxu0 %v2181
        %v2331 = vpop.f32.mrb[0].mxu0
        %v2332 = vadd.f32 %v2123, %v2331
        %v2333 = vpop.f32.mrb[0].mxu0
        %v2334 = vpop.f32.mrb[0].mxu0
        %v2335 = vadd.f32 %v2123, %v2334
        %v2336 = vpop.f32.mrb[0].mxu0
        %2337 = vmatprep.mubr.bf16.mxu0 0
        %2338 = vmatmul.mubr.bf16.gmra.mrb[0].mxu0 %v2184
        %v2339 = vpop.f32.mrb[0].mxu0
        %v2340 = vadd.f32 %v2123, %v2339
        %v2341 = vpop.f32.mrb[0].mxu0
        %v2342 = vpop.f32.mrb[0].mxu0
        %v2343 = vadd.f32 %v2123, %v2342
        %v2344 = vpop.f32.mrb[0].mxu0
        %2345 = vmatprep.mubr.bf16.mxu0 0
        %2346 = vmatmul.mubr.bf16.gmra.mrb[0].mxu0 %v2187
        %v2347 = vpop.f32.mrb[0].mxu0
        %v2348 = vadd.f32 %v2123, %v2347
        %v2349 = vpop.f32.mrb[0].mxu0
        %v2350 = vpop.f32.mrb[0].mxu0
        %v2351 = vadd.f32 %v2123, %v2350
        %v2352 = vpop.f32.mrb[0].mxu0
        %2353 = vdwg.mxu0
        %2354 = vst [vmem:[%s163] sm:$0xff] %v2228
        %2355 = vst [vmem:[%s163 + $0x8] sm:$0xff] %v2231
        %2356 = vst [vmem:[%s163 + $0x10] sm:$0xff] %v2236
        %2357 = vst [vmem:[%s163 + $0x18] sm:$0xff] %v2239
        %2358 = vst [vmem:[%s163 + $0x20] sm:$0xff] %v2244
        %2359 = vst [vmem:[%s163 + $0x28] sm:$0xff] %v2247
        %2360 = vst [vmem:[%s163 + $0x30] sm:$0xff] %v2252
        %2361 = vst [vmem:[%s163 + $0x38] sm:$0xff] %v2255
        %2362 = vst [vmem:[%s163 + $0x40] sm:$0xff] %v2260
        %2363 = vst [vmem:[%s163 + $0x48] sm:$0xff] %v2263
        %2364 = vst [vmem:[%s163 + $0x50] sm:$0xff] %v2268
        %2365 = vst [vmem:[%s163 + $0x58] sm:$0xff] %v2271
        %2366 = vst [vmem:[%s163 + $0x60] sm:$0xff] %v2276
        %2367 = vst [vmem:[%s163 + $0x68] sm:$0xff] %v2279
        %2368 = vst [vmem:[%s163 + $0x70] sm:$0xff] %v2284
        %2369 = vst [vmem:[%s163 + $0x78] sm:$0xff] %v2287
        %2370 = vst [vmem:[%s163 + $0x80] sm:$0xff] %v2292
        %2371 = vst [vmem:[%s163 + $0x88] sm:$0xff] %v2295
        %2372 = vst [vmem:[%s163 + $0x90] sm:$0xff] %v2300
        %2373 = vst [vmem:[%s163 + $0x98] sm:$0xff] %v2303
        %2374 = vst [vmem:[%s163 + $0xa0] sm:$0xff] %v2308
        %2375 = vst [vmem:[%s163 + $0xa8] sm:$0xff] %v2311
        %2376 = vst [vmem:[%s163 + $0xb0] sm:$0xff] %v2316
        %2377 = vst [vmem:[%s163 + $0xb8] sm:$0xff] %v2319
        %2378 = vst [vmem:[%s163 + $0xc0] sm:$0xff] %v2324
        %2379 = vst [vmem:[%s163 + $0xc8] sm:$0xff] %v2327
        %2380 = vst [vmem:[%s163 + $0xd0] sm:$0xff] %v2332
        %2381 = vst [vmem:[%s163 + $0xd8] sm:$0xff] %v2335
        %2382 = vst [vmem:[%s163 + $0xe0] sm:$0xff] %v2340
        %2383 = vst [vmem:[%s163 + $0xe8] sm:$0xff] %v2343
        %2384 = vst [vmem:[%s163 + $0xf0] sm:$0xff] %v2348
        %2385 = vst [vmem:[%s163 + $0xf8] sm:$0xff] %v2351
        %s2386 = sand.u32 %s93, 1
        %s2387 = scalar_lea.sflag [#allocation4], %s2386
        %s2388 = sand.u32 %s93, 1
        %s2389 = smul.addr %s2388, 256
        %s2390 = scalar_lea.vmem [#allocation3], %s2389
        // Predicated region
        $region33: #{tpu_custom_call.1} parent=31 // pred_check
          %p2391 = pneg %p103
        $region34: #{tpu_custom_call.1} parent=31 // pred_check_branch
          %2393 = sbr.rel (%p2391) target = $region36
        $region35: #{tpu_custom_call.1} parent=31 // pred_region
          %s2395 = ssub.s32 4096, 4096
          %2396 = vsyncadd %s2387, %s2395
          %s2397 = smul.addr %s17, 32
          %s2398 = smul.addr %s2397, 128
          %s2399 = scalar_lea.hbm %s3, %s2398
          %s2400 = sshll.u32 %s2390, 4
          %s2401 = int_to_ptr.vmem [resolvable:$true] %s2400
          %2406 = dma.vmem_to_hbm [thread:$0]  %s2401, 4096, %s2399, %s2387, 128, 128, 8
        $region36: #{tpu_custom_call.1} parent=31 // pred_fallthru
          _
      $region32: #{tpu_custom_call.1} parent=5 // pred_fallthru
        _
      %p2407 = scmp.le.s32.totalorder 2, %s12
      // Predicated region
      $region37: #{tpu_custom_call.1} parent=5 // pred_check
        %p2408 = pneg %p2407
      $region38: #{tpu_custom_call.1} parent=5 // pred_check_branch
        %2410 = sbr.rel (%p2408) target = $region40
      $region39: #{tpu_custom_call.1} parent=5 // pred_region
        %s2411 = ssub.s32 %s12, 2
        // Predicated region
        $region41: #{tpu_custom_call.1} parent=39 // pred_check
          %p2412 = pneg %p109
        $region42: #{tpu_custom_call.1} parent=39 // pred_check_branch
          %2414 = sbr.rel (%p2412) target = $region44
        $region43: #{tpu_custom_call.1} parent=39 // pred_region
          %s2415 = sand.u32 %s94, 1
          %s2416 = scalar_lea.sflag [#allocation4], %s2415
          %s2417 = sand.u32 %s94, 1
          %s2418 = smul.addr %s2417, 256
          %s2419 = scalar_lea.vmem [#allocation3], %s2418
          %2420 = dma.done %s2416, 4096
        $region44: #{tpu_custom_call.1} parent=39 // pred_fallthru
          _
      $region40: #{tpu_custom_call.1} parent=5 // pred_fallthru
        _
    $region6: #{tpu_custom_call.1} parent=1 // loop_footer
      %s16 = sadd.s32 1, %s12
    $region7: #{tpu_custom_call.1} parent=1 // loop_footer_branch
      %11 = sbr.rel target = $region3
    $region8: #{tpu_custom_call.1} parent=1 // loop_exit
      _
    %2421 = vsyncpa [#allocation4], 1
    %s2422 = scalar_lea.sflag [#allocation4], 1
    %2423 = vsyncpa %s2422, 1

</llo_original>
